<compile_context>
chip_gen: v6e
topology: v6e:2x2x1
jax: 0.10.0
libtpu: 0.0.40
codegen_flags: <defaults>
</compile_context>

<pallas_src>
import functools
import math

import jax
import jax.numpy as jnp
from jax.experimental import pallas as pl
from jax.experimental.pallas import tpu as pltpu


def _round_up(x, m):
    return ((x + m - 1) // m) * m


# ----------------------------------------------------------------------------
# Pallas kernel: fused-gate GRU recurrence, T_BLK timesteps per grid iteration,
# both directions handled by one call via a leading "parallel" grid axis.
# ----------------------------------------------------------------------------
def _gru_recurrence_kernel(gi_ref, whh_ref, bhhn_ref, h0_ref, out_ref, hlast_ref,
                           *, t_blk, hp, t_real, n_t_blocks, compute_dtype):
    """Grid = (num_dirs, n_time_blocks); dim 0 "parallel", dim 1 sequential.

    Refs (per grid step):
      gi_ref   : (1, t_blk, Bp, 3*Hp) f32  precomputed x@W_ih with folded biases
      whh_ref  : (1, Hp, 3*Hp)             fused hidden->gate weights (bf16/f32)
      bhhn_ref : (1, 1, Hp)       f32      hidden bias of the n gate
      h0_ref   : (1, Bp, Hp)      f32      initial hidden state
      out_ref  : (1, t_blk, Bp, Hp) f32    per-timestep hidden outputs
      hlast_ref: (1, Bp, Hp)      f32      resident recurrent state / final hidden
    """
    d = pl.program_id(0)       # direction: 0 = forward, 1 = backward
    bt = pl.program_id(1)      # time-block index (strictly sequential)

    # The final-hidden output block has a constant index along the time axis, so
    # it stays VMEM-resident and doubles as the recurrent state (no scratch).
    @pl.when(bt == 0)
    def _():
        hlast_ref[0] = h0_ref[0]

    whh = whh_ref[0]                       # (Hp, 3Hp), reused across all steps
    bhhn = bhhn_ref[0]                     # (1, Hp)

    # First global timestep covered by this block (time blocks are walked in
    # reverse order for the backward direction via the index_map).
    block_t0 = (d * (n_t_blocks - 1) + (1 - 2 * d) * bt) * t_blk

    def step(i, h):
        # In-block time index: forward walks 0..t_blk-1, backward t_blk-1..0.
        idx = d * (t_blk - 1) + (1 - 2 * d) * i
        gi = gi_ref[0, idx]                                      # (Bp, 3Hp) f32
        gh = jnp.dot(h.astype(compute_dtype), whh,               # single fused matmul
                     preferred_element_type=jnp.float32)         # (Bp, 3Hp) f32
        r = jax.nn.sigmoid(gi[:, :hp] + gh[:, :hp])
        z = jax.nn.sigmoid(gi[:, hp:2 * hp] + gh[:, hp:2 * hp])
        n = jnp.tanh(gi[:, 2 * hp:] + r * (gh[:, 2 * hp:] + bhhn))
        h_new = (1.0 - z) * n + z * h
        # Timesteps beyond T (T padded up to a multiple of t_blk) are no-ops.
        h_new = jnp.where(block_t0 + idx < t_real, h_new, h)
        out_ref[0, idx] = h_new.astype(out_ref.dtype)
        return h_new

    h = jax.lax.fori_loop(0, t_blk, step, hlast_ref[0], unroll=True)
    hlast_ref[0] = h


def _gru_layer_pallas(gi, whh, bhhn, h0, *, t_real, t_blk, compute_dtype):
    """gi: (nd, Tp, Bp, 3Hp) f32; whh: (nd, Hp, 3Hp); bhhn: (nd, 1, Hp) f32;
    h0: (nd, Bp, Hp) f32.  Returns (out (nd, Tp, Bp, Hp), h_last (nd, Bp, Hp))."""
    num_dirs, t_pad, b_pad, g = gi.shape
    hp = g // 3
    n_t = t_pad // t_blk

    def t_map(di, ti):
        # forward: time block ti; backward: time block (n_t - 1 - ti)
        return (di, di * (n_t - 1) + (1 - 2 * di) * ti, 0, 0)

    def const_map(di, ti):
        return (di, 0, 0)

    kernel = functools.partial(
        _gru_recurrence_kernel, t_blk=t_blk, hp=hp, t_real=t_real,
        n_t_blocks=n_t, compute_dtype=compute_dtype)

    out, h_last = pl.pallas_call(
        kernel,
        grid_spec=pltpu.PrefetchScalarGridSpec(
            num_scalar_prefetch=0,
            grid=(num_dirs, n_t),
            in_specs=[
                pl.BlockSpec((1, t_blk, b_pad, 3 * hp), t_map),   # GI (streamed)
                pl.BlockSpec((1, hp, 3 * hp), const_map),         # W_hh (resident)
                pl.BlockSpec((1, 1, hp), const_map),              # b_hh (n gate)
                pl.BlockSpec((1, b_pad, hp), const_map),          # h0
            ],
            out_specs=[
                pl.BlockSpec((1, t_blk, b_pad, hp), t_map),       # per-step hidden
                pl.BlockSpec((1, b_pad, hp), const_map),          # final hidden
            ],
        ),
        out_shape=(
            jax.ShapeDtypeStruct((num_dirs, t_pad, b_pad, hp), jnp.float32),
            jax.ShapeDtypeStruct((num_dirs, b_pad, hp), jnp.float32),
        ),
        compiler_params=pltpu.CompilerParams(
            # Directions are independent -> megacore-parallel on v7x; the time
            # axis carries the recurrence and must stay sequential.
            dimension_semantics=("parallel", "arbitrary")),
    )(gi, whh, bhhn, h0)
    return out, h_last


# ----------------------------------------------------------------------------
# RNNEncoder forward (multi-layer, optionally bidirectional).
# ----------------------------------------------------------------------------
def rnn_encoder_forward(kparams, inputs, *, num_layers, bi, rnn_hidden,
                        hidden=None, t_blk=8, compute_dtype=jnp.bfloat16):
    """inputs: (B, T, input_size) f32 batch_first.  Returns (outputs, last_hidden)
    matching the PyTorch module: outputs (B, T, hidden_size),
    last_hidden (num_layers, B, num_directions * rnn_hidden)."""
    B, T, _ = inputs.shape
    num_dirs = 2 if bi else 1
    H = rnn_hidden
    Hp = _round_up(H, 128)
    Bp = _round_up(B, 8)
    t_blk = max(1, min(t_blk, T))
    Tp = _round_up(T, t_blk)

    x = inputs
    layer_hiddens = []
    for layer in range(num_layers):
        p = kparams[layer]
        # Hoisted input->hidden projection: one big matmul over ALL timesteps and
        # both directions.  Layer 0 also folds in the batch_first -> time-major
        # transpose so no separate transpose pass is needed.
        eq = "btd,kdg->ktbg" if layer == 0 else "tbd,kdg->ktbg"
        gi = jnp.einsum(eq, x.astype(compute_dtype), p["wih"],
                        preferred_element_type=jnp.float32)
        gi = gi + p["gi_bias"]                                    # (nd, T, B, 3Hp)
        gi = jnp.pad(gi, ((0, 0), (0, Tp - T), (0, Bp - B), (0, 0)))

        if hidden is not None:
            h0 = hidden[layer * num_dirs:(layer + 1) * num_dirs].astype(jnp.float32)
            h0 = jnp.pad(h0, ((0, 0), (0, Bp - B), (0, Hp - H)))
        else:
            h0 = jnp.zeros((num_dirs, Bp, Hp), jnp.float32)

        out, h_last = _gru_layer_pallas(gi, p["whh"], p["bhhn"], h0,
                                        t_real=T, t_blk=t_blk,
                                        compute_dtype=compute_dtype)
        # TODO(synk): inter-layer dropout (training mode) is not applied.
        o = out[:, :T, :B, :H]                                    # (nd, T, B, H)
        x = jnp.transpose(o, (1, 2, 0, 3)).reshape(T, B, num_dirs * H)  # time-major
        layer_hiddens.append(h_last[:, :B, :H])

    outputs = jnp.transpose(x, (1, 0, 2))                         # (B, T, hidden)
    last_hidden = jnp.concatenate(layer_hiddens, axis=0)          # (L*nd, B, H)
    if bi:
        # _bridge_bidirectional_hidden: (L*2,B,H)->(L,2,B,H)->(L,B,2,H)->(L,B,2H)
        last_hidden = last_hidden.reshape(num_layers, 2, B, H)
        last_hidden = jnp.transpose(last_hidden, (0, 2, 1, 3)).reshape(
            num_layers, B, 2 * H)
    return outputs, last_hidden


# ----------------------------------------------------------------------------
# Parameters: PyTorch nn.GRU layout + kernel (fused-gate, lane-padded) layout.
# ----------------------------------------------------------------------------
def init_raw_params(key, *, input_size, rnn_hidden, num_layers, bi):
    """PyTorch nn.GRU shapes & init: uniform(-1/sqrt(H), 1/sqrt(H))."""
    num_dirs = 2 if bi else 1
    H = rnn_hidden
    bound = 1.0 / math.sqrt(H)
    raw = {}
    for layer in range(num_layers):
        in_sz = input_size if layer == 0 else H * num_dirs
        for d in range(num_dirs):
            key, k1, k2, k3, k4 = jax.random.split(key, 5)
            raw[(layer, d)] = (
                jax.random.uniform(k1, (3 * H, in_sz), jnp.float32, -bound, bound),
                jax.random.uniform(k2, (3 * H, H), jnp.float32, -bound, bound),
                jax.random.uniform(k3, (3 * H,), jnp.float32, -bound, bound),
                jax.random.uniform(k4, (3 * H,), jnp.float32, -bound, bound),
            )
    return raw


def pack_params(raw, *, input_size, rnn_hidden, num_layers, bi,
                compute_dtype=jnp.bfloat16):
    """Kernel layout: fused (r|z|n) gates, lane-padded to Hp = round_up(H, 128),
    weights pre-transposed for x @ W, input-side biases folded, bf16 weights."""
    num_dirs = 2 if bi else 1
    H = rnn_hidden
    Hp = _round_up(H, 128)
    ph = Hp - H
    kparams = []
    for layer in range(num_layers):
        in_sz = input_size if layer == 0 else H * num_dirs
        wih_l, whh_l, gib_l, bhhn_l = [], [], [], []
        for d in range(num_dirs):
            w_ih, w_hh, b_ih, b_hh = raw[(layer, d)]
            # (3H, D) -> (D, 3, Hp) -> (D, 3Hp)
            wih_k = jnp.transpose(w_ih.reshape(3, H, in_sz), (2, 0, 1))
            wih_k = jnp.pad(wih_k, ((0, 0), (0, 0), (0, ph))).reshape(in_sz, 3 * Hp)
            # (3H, H) -> (H, 3, Hp) -> (H, 3Hp) -> (Hp, 3Hp)
            whh_k = jnp.transpose(w_hh.reshape(3, H, H), (2, 0, 1))
            whh_k = jnp.pad(whh_k, ((0, 0), (0, 0), (0, ph))).reshape(H, 3 * Hp)
            whh_k = jnp.pad(whh_k, ((0, ph), (0, 0)))
            # Fold b_ih (all gates) + b_hh (r, z gates) into the precomputed GI;
            # the n-gate b_hh must stay inside r * (h @ W_hh_n + b_hh_n).
            bih3 = jnp.pad(b_ih.reshape(3, H), ((0, 0), (0, ph)))
            bhh3 = jnp.pad(b_hh.reshape(3, H), ((0, 0), (0, ph)))
            gib = (bih3 + bhh3 * jnp.array([[1.0], [1.0], [0.0]])).reshape(3 * Hp)
            wih_l.append(wih_k)
            whh_l.append(whh_k)
            gib_l.append(gib)
            bhhn_l.append(bhh3[2].reshape(1, Hp))
        kparams.append({
            "wih": jnp.stack(wih_l).astype(compute_dtype),      # (nd, D_in, 3Hp)
            "whh": jnp.stack(whh_l).astype(compute_dtype),      # (nd, Hp, 3Hp)
            "gi_bias": jnp.stack(gib_l)[:, None, None, :],      # (nd, 1, 1, 3Hp) f32
            "bhhn": jnp.stack(bhhn_l),                          # (nd, 1, Hp) f32
        })
    return kparams


# ----------------------------------------------------------------------------
# Pure-JAX reference GRU (for verification).
# ----------------------------------------------------------------------------
def _ref_gru_dir(x_tbd, w_ih, w_hh, b_ih, b_hh, h0, reverse):
    def step(h, x):
        gi = x @ w_ih.T + b_ih
        gh = h @ w_hh.T + b_hh
        i_r, i_z, i_n = jnp.split(gi, 3, axis=-1)
        h_r, h_z, h_n = jnp.split(gh, 3, axis=-1)
        r = jax.nn.sigmoid(i_r + h_r)
        z = jax.nn.sigmoid(i_z + h_z)
        n = jnp.tanh(i_n + r * h_n)
        h_new = (1.0 - z) * n + z * h
        return h_new, h_new

    xs = x_tbd[::-1] if reverse else x_tbd
    h_last, outs = jax.lax.scan(step, h0, xs)
    if reverse:
        outs = outs[::-1]
    return outs, h_last


def ref_forward(raw, inputs, *, num_layers, bi, rnn_hidden):
    B, T, _ = inputs.shape
    num_dirs = 2 if bi else 1
    x = jnp.transpose(inputs, (1, 0, 2))
    layer_hiddens = []
    for layer in range(num_layers):
        dir_outs = []
        for d in range(num_dirs):
            w_ih, w_hh, b_ih, b_hh = raw[(layer, d)]
            h0 = jnp.zeros((B, rnn_hidden), jnp.float32)
            o, hl = _ref_gru_dir(x, w_ih, w_hh, b_ih, b_hh, h0, reverse=(d == 1))
            dir_outs.append(o)
            layer_hiddens.append(hl)
        x = jnp.concatenate(dir_outs, axis=-1) if num_dirs == 2 else dir_outs[0]
    outputs = jnp.transpose(x, (1, 0, 2))
    last_hidden = jnp.stack(layer_hiddens, axis=0)
    if bi:
        last_hidden = last_hidden.reshape(num_layers, 2, B, rnn_hidden)
        last_hidden = jnp.transpose(last_hidden, (0, 2, 1, 3))
        last_hidden = last_hidden.reshape(num_layers, B, 2 * rnn_hidden)
    return outputs, last_hidden


if __name__ == "__main__":
    # Config mirroring the PyTorch module: bi-GRU, 1 layer, no embedder, no lengths.
    batch = 2
    seq_len = 8
    input_size = 16
    hidden_size = 32
    bi = True
    num_layers = 1
    num_dirs = 2 if bi else 1
    rnn_hidden = hidden_size // num_dirs

    key = jax.random.PRNGKey(0)
    key, pkey, xkey = jax.random.split(key, 3)
    raw = init_raw_params(pkey, input_size=input_size, rnn_hidden=rnn_hidden,
                          num_layers=num_layers, bi=bi)
    x = jax.random.normal(xkey, (batch, seq_len, input_size), jnp.float32)

    fwd = functools.partial(rnn_encoder_forward, num_layers=num_layers, bi=bi,
                            rnn_hidden=rnn_hidden, t_blk=8)

    # Production path: bf16 MXU operands, f32 accumulation / state / gating.
    kp_bf16 = pack_params(raw, input_size=input_size, rnn_hidden=rnn_hidden,
                          num_layers=num_layers, bi=bi, compute_dtype=jnp.bfloat16)
    out_bf16, hid_bf16 = fwd(kp_bf16, x, compute_dtype=jnp.bfloat16)

    # Exactness path: identical kernel with f32 matmul operands.
    kp_f32 = pack_params(raw, input_size=input_size, rnn_hidden=rnn_hidden,
                         num_layers=num_layers, bi=bi, compute_dtype=jnp.float32)
    out_f32, hid_f32 = fwd(kp_f32, x, compute_dtype=jnp.float32)

    jax.block_until_ready((out_bf16, hid_bf16, out_f32, hid_f32))

    assert out_bf16.shape == (batch, seq_len, hidden_size)
    assert hid_bf16.shape == (num_layers, batch, hidden_size)

    ref_out, ref_hid = ref_forward(raw, x, num_layers=num_layers, bi=bi,
                                   rnn_hidden=rnn_hidden)
    # f32 kernel path must match the reference tightly ...
    assert jnp.allclose(out_f32, ref_out, atol=1e-4, rtol=1e-4)
    assert jnp.allclose(hid_f32, ref_hid, atol=1e-4, rtol=1e-4)
    # ... and the bf16-MXU path within bf16 rounding of the short recurrence.
    assert jnp.allclose(out_bf16, ref_out, atol=5e-2, rtol=5e-2)
    assert jnp.allclose(hid_bf16, ref_hid, atol=5e-2, rtol=5e-2)

    print("KERNEL_OK")
</pallas_src>

<mosaic_0001>
module attributes {stable_mosaic.version = 11 : i64} {
  func.func @_gru_recurrence_kernel(%arg0: i32, %arg1: i32, %arg2: memref<1x8x8x384xf32, #tpu.memory_space<vmem>>, %arg3: memref<1x128x384xbf16, #tpu.memory_space<vmem>>, %arg4: memref<1x1x128xf32, #tpu.memory_space<vmem>>, %arg5: memref<1x8x128xf32, #tpu.memory_space<vmem>>, %arg6: memref<1x8x8x128xf32, #tpu.memory_space<vmem>>, %arg7: memref<1x8x128xf32, #tpu.memory_space<vmem>>) attributes {dimension_semantics = [#tpu.dimension_semantics<parallel>, #tpu.dimension_semantics<arbitrary>], iteration_bounds = array<i64: 2, 1>, scalar_prefetch = 0 : i64, scratch_operands = 0 : i64, tpu.core_type = #tpu.core_type<tc>, window_params = [{transform_indices = @transform_0, window_bounds = array<i64: 1, 8, 8, 384>}, {transform_indices = @transform_1, window_bounds = array<i64: 1, 128, 384>}, {transform_indices = @transform_2, window_bounds = array<i64: 1, 1, 128>}, {transform_indices = @transform_3, window_bounds = array<i64: 1, 8, 128>}, {transform_indices = @transform_4, window_bounds = array<i64: 1, 8, 8, 128>}, {transform_indices = @transform_5, window_bounds = array<i64: 1, 8, 128>}]} {
    %c0_i32 = arith.constant 0 : i32
    %0 = arith.cmpi eq, %arg1, %c0_i32 : i32
    %1 = arith.extui %0 : i1 to i32
    %c0_i32_0 = arith.constant 0 : i32
    %2 = arith.cmpi ne, %1, %c0_i32_0 : i32
    scf.if %2 {
      %c0_128 = arith.constant 0 : index
      %c0_129 = arith.constant 0 : index
      %c0_130 = arith.constant 0 : index
      %378 = vector.load %arg5[%c0_128, %c0_129, %c0_130] : memref<1x8x128xf32, #tpu.memory_space<vmem>>, vector<1x8x128xf32>
      %379 = vector.shape_cast %378 : vector<1x8x128xf32> to vector<8x128xf32>
      %c0_131 = arith.constant 0 : index
      %c0_132 = arith.constant 0 : index
      %c0_133 = arith.constant 0 : index
      %380 = vector.load %arg7[%c0_131, %c0_132, %c0_133] : memref<1x8x128xf32, #tpu.memory_space<vmem>>, vector<1x8x128xf32>
      %381 = vector.shape_cast %380 : vector<1x8x128xf32> to vector<8x128xf32>
      %382 = vector.shape_cast %379 : vector<8x128xf32> to vector<1x8x128xf32>
      tpu.vector_store %arg7[%c0_131, %c0_132, %c0_133], %382 {strides = array<i32>} : memref<1x8x128xf32, #tpu.memory_space<vmem>>, vector<1x8x128xf32>,
    } else {
    }
    %c0 = arith.constant 0 : index
    %c0_1 = arith.constant 0 : index
    %c0_2 = arith.constant 0 : index
    %3 = vector.load %arg3[%c0, %c0_1, %c0_2] : memref<1x128x384xbf16, #tpu.memory_space<vmem>>, vector<1x128x384xbf16>
    %4 = vector.shape_cast %3 : vector<1x128x384xbf16> to vector<128x384xbf16>
    %c0_3 = arith.constant 0 : index
    %c0_4 = arith.constant 0 : index
    %c0_5 = arith.constant 0 : index
    %5 = vector.load %arg4[%c0_3, %c0_4, %c0_5] : memref<1x1x128xf32, #tpu.memory_space<vmem>>, vector<1x1x128xf32>
    %6 = vector.shape_cast %5 : vector<1x1x128xf32> to vector<1x128xf32>
    %c0_i32_6 = arith.constant 0 : i32
    %7 = arith.muli %arg0, %c0_i32_6 : i32
    %c2_i32 = arith.constant 2 : i32
    %8 = arith.muli %c2_i32, %arg0 : i32
    %c1_i32 = arith.constant 1 : i32
    %9 = arith.subi %c1_i32, %8 : i32
    %10 = arith.muli %9, %arg1 : i32
    %11 = arith.addi %7, %10 : i32
    %c8_i32 = arith.constant 8 : i32
    %12 = arith.muli %11, %c8_i32 : i32
    %c0_7 = arith.constant 0 : index
    %c0_8 = arith.constant 0 : index
    %c0_9 = arith.constant 0 : index
    %13 = vector.load %arg7[%c0_7, %c0_8, %c0_9] : memref<1x8x128xf32, #tpu.memory_space<vmem>>, vector<1x8x128xf32>
    %14 = vector.shape_cast %13 : vector<1x8x128xf32> to vector<8x128xf32>
    %c0_i32_10 = arith.constant 0 : i32
    %c7_i32 = arith.constant 7 : i32
    %15 = arith.muli %arg0, %c7_i32 : i32
    %c2_i32_11 = arith.constant 2 : i32
    %16 = arith.muli %c2_i32_11, %arg0 : i32
    %c1_i32_12 = arith.constant 1 : i32
    %17 = arith.subi %c1_i32_12, %16 : i32
    %18 = arith.muli %17, %c0_i32_10 : i32
    %19 = arith.addi %15, %18 : i32
    %c0_13 = arith.constant 0 : index
    %20 = arith.index_cast %19 : i32 to index
    %c0_14 = arith.constant 0 : index
    %c0_15 = arith.constant 0 : index
    %21 = vector.load %arg2[%c0_13, %20, %c0_14, %c0_15] : memref<1x8x8x384xf32, #tpu.memory_space<vmem>>, vector<1x1x8x384xf32>
    %22 = vector.shape_cast %21 : vector<1x1x8x384xf32> to vector<8x384xf32>
    %23 = arith.truncf %14 : vector<8x128xf32> to vector<8x128xbf16>
    %cst = arith.constant dense<0.000000e+00> : vector<8x384xf32>
    %24 = tpu.matmul %23, %4, %cst {dimension_numbers = #tpu.dot_dimension_numbers<[1], [0], [0], [1], [0, 0, 1, 1], [], []>} : vector<8x128xbf16>, vector<128x384xbf16>, vector<8x384xf32> -> vector<8x384xf32>
    %25 = vector.extract_strided_slice %22 {offsets = [0, 0], sizes = [8, 128], strides = [1, 1]} : vector<8x384xf32> to vector<8x128xf32>
    %26 = vector.extract_strided_slice %24 {offsets = [0, 0], sizes = [8, 128], strides = [1, 1]} : vector<8x384xf32> to vector<8x128xf32>
    %27 = arith.addf %25, %26 : vector<8x128xf32>
    %28 = arith.negf %27 : vector<8x128xf32>
    %29 = math.exp %28 : vector<8x128xf32>
    %cst_16 = arith.constant 1.000000e+00 : f32
    %30 = vector.broadcast %cst_16 : f32 to vector<8x128xf32>
    %31 = arith.addf %30, %29 : vector<8x128xf32>
    %32 = arith.divf %30, %31 : vector<8x128xf32>
    %33 = vector.extract_strided_slice %22 {offsets = [0, 128], sizes = [8, 128], strides = [1, 1]} : vector<8x384xf32> to vector<8x128xf32>
    %34 = vector.extract_strided_slice %24 {offsets = [0, 128], sizes = [8, 128], strides = [1, 1]} : vector<8x384xf32> to vector<8x128xf32>
    %35 = arith.addf %33, %34 : vector<8x128xf32>
    %36 = arith.negf %35 : vector<8x128xf32>
    %37 = math.exp %36 : vector<8x128xf32>
    %cst_17 = arith.constant 1.000000e+00 : f32
    %38 = vector.broadcast %cst_17 : f32 to vector<8x128xf32>
    %39 = arith.addf %38, %37 : vector<8x128xf32>
    %40 = arith.divf %38, %39 : vector<8x128xf32>
    %41 = vector.extract_strided_slice %22 {offsets = [0, 256], sizes = [8, 128], strides = [1, 1]} : vector<8x384xf32> to vector<8x128xf32>
    %42 = vector.extract_strided_slice %24 {offsets = [0, 256], sizes = [8, 128], strides = [1, 1]} : vector<8x384xf32> to vector<8x128xf32>
    %43 = vector.broadcast %6 : vector<1x128xf32> to vector<8x128xf32>
    %44 = arith.addf %42, %43 : vector<8x128xf32>
    %45 = arith.mulf %32, %44 : vector<8x128xf32>
    %46 = arith.addf %41, %45 : vector<8x128xf32>
    %47 = math.tanh %46 : vector<8x128xf32>
    %cst_18 = arith.constant 1.000000e+00 : f32
    %48 = vector.broadcast %cst_18 : f32 to vector<8x128xf32>
    %49 = arith.subf %48, %40 : vector<8x128xf32>
    %50 = arith.mulf %49, %47 : vector<8x128xf32>
    %51 = arith.mulf %40, %14 : vector<8x128xf32>
    %52 = arith.addf %50, %51 : vector<8x128xf32>
    %53 = arith.addi %12, %19 : i32
    %c8_i32_19 = arith.constant 8 : i32
    %54 = arith.cmpi slt, %53, %c8_i32_19 : i32
    %55 = arith.select %54, %52, %14 : vector<8x128xf32>
    %c0_20 = arith.constant 0 : index
    %56 = arith.index_cast %19 : i32 to index
    %c0_21 = arith.constant 0 : index
    %c0_22 = arith.constant 0 : index
    %57 = vector.load %arg6[%c0_20, %56, %c0_21, %c0_22] : memref<1x8x8x128xf32, #tpu.memory_space<vmem>>, vector<1x1x8x128xf32>
    %58 = vector.shape_cast %57 : vector<1x1x8x128xf32> to vector<8x128xf32>
    %59 = vector.shape_cast %55 : vector<8x128xf32> to vector<1x1x8x128xf32>
    tpu.vector_store %arg6[%c0_20, %56, %c0_21, %c0_22], %59 {strides = array<i32>} : memref<1x8x8x128xf32, #tpu.memory_space<vmem>>, vector<1x1x8x128xf32>,
    %c1_i32_23 = arith.constant 1 : i32
    %c7_i32_24 = arith.constant 7 : i32
    %60 = arith.muli %arg0, %c7_i32_24 : i32
    %c2_i32_25 = arith.constant 2 : i32
    %61 = arith.muli %c2_i32_25, %arg0 : i32
    %c1_i32_26 = arith.constant 1 : i32
    %62 = arith.subi %c1_i32_26, %61 : i32
    %63 = arith.muli %62, %c1_i32_23 : i32
    %64 = arith.addi %60, %63 : i32
    %c0_27 = arith.constant 0 : index
    %65 = arith.index_cast %64 : i32 to index
    %c0_28 = arith.constant 0 : index
    %c0_29 = arith.constant 0 : index
    %66 = vector.load %arg2[%c0_27, %65, %c0_28, %c0_29] : memref<1x8x8x384xf32, #tpu.memory_space<vmem>>, vector<1x1x8x384xf32>
    %67 = vector.shape_cast %66 : vector<1x1x8x384xf32> to vector<8x384xf32>
    %68 = arith.truncf %55 : vector<8x128xf32> to vector<8x128xbf16>
    %cst_30 = arith.constant dense<0.000000e+00> : vector<8x384xf32>
    %69 = tpu.matmul %68, %4, %cst_30 {dimension_numbers = #tpu.dot_dimension_numbers<[1], [0], [0], [1], [0, 0, 1, 1], [], []>} : vector<8x128xbf16>, vector<128x384xbf16>, vector<8x384xf32> -> vector<8x384xf32>
    %70 = vector.extract_strided_slice %67 {offsets = [0, 0], sizes = [8, 128], strides = [1, 1]} : vector<8x384xf32> to vector<8x128xf32>
    %71 = vector.extract_strided_slice %69 {offsets = [0, 0], sizes = [8, 128], strides = [1, 1]} : vector<8x384xf32> to vector<8x128xf32>
    %72 = arith.addf %70, %71 : vector<8x128xf32>
    %73 = arith.negf %72 : vector<8x128xf32>
    %74 = math.exp %73 : vector<8x128xf32>
    %cst_31 = arith.constant 1.000000e+00 : f32
    %75 = vector.broadcast %cst_31 : f32 to vector<8x128xf32>
    %76 = arith.addf %75, %74 : vector<8x128xf32>
    %77 = arith.divf %75, %76 : vector<8x128xf32>
    %78 = vector.extract_strided_slice %67 {offsets = [0, 128], sizes = [8, 128], strides = [1, 1]} : vector<8x384xf32> to vector<8x128xf32>
    %79 = vector.extract_strided_slice %69 {offsets = [0, 128], sizes = [8, 128], strides = [1, 1]} : vector<8x384xf32> to vector<8x128xf32>
    %80 = arith.addf %78, %79 : vector<8x128xf32>
    %81 = arith.negf %80 : vector<8x128xf32>
    %82 = math.exp %81 : vector<8x128xf32>
    %cst_32 = arith.constant 1.000000e+00 : f32
    %83 = vector.broadcast %cst_32 : f32 to vector<8x128xf32>
    %84 = arith.addf %83, %82 : vector<8x128xf32>
    %85 = arith.divf %83, %84 : vector<8x128xf32>
    %86 = vector.extract_strided_slice %67 {offsets = [0, 256], sizes = [8, 128], strides = [1, 1]} : vector<8x384xf32> to vector<8x128xf32>
    %87 = vector.extract_strided_slice %69 {offsets = [0, 256], sizes = [8, 128], strides = [1, 1]} : vector<8x384xf32> to vector<8x128xf32>
    %88 = vector.broadcast %6 : vector<1x128xf32> to vector<8x128xf32>
    %89 = arith.addf %87, %88 : vector<8x128xf32>
    %90 = arith.mulf %77, %89 : vector<8x128xf32>
    %91 = arith.addf %86, %90 : vector<8x128xf32>
    %92 = math.tanh %91 : vector<8x128xf32>
    %cst_33 = arith.constant 1.000000e+00 : f32
    %93 = vector.broadcast %cst_33 : f32 to vector<8x128xf32>
    %94 = arith.subf %93, %85 : vector<8x128xf32>
    %95 = arith.mulf %94, %92 : vector<8x128xf32>
    %96 = arith.mulf %85, %55 : vector<8x128xf32>
    %97 = arith.addf %95, %96 : vector<8x128xf32>
    %98 = arith.addi %12, %64 : i32
    %c8_i32_34 = arith.constant 8 : i32
    %99 = arith.cmpi slt, %98, %c8_i32_34 : i32
    %100 = arith.select %99, %97, %55 : vector<8x128xf32>
    %c0_35 = arith.constant 0 : index
    %101 = arith.index_cast %64 : i32 to index
    %c0_36 = arith.constant 0 : index
    %c0_37 = arith.constant 0 : index
    %102 = vector.load %arg6[%c0_35, %101, %c0_36, %c0_37] : memref<1x8x8x128xf32, #tpu.memory_space<vmem>>, vector<1x1x8x128xf32>
    %103 = vector.shape_cast %102 : vector<1x1x8x128xf32> to vector<8x128xf32>
    %104 = vector.shape_cast %100 : vector<8x128xf32> to vector<1x1x8x128xf32>
    tpu.vector_store %arg6[%c0_35, %101, %c0_36, %c0_37], %104 {strides = array<i32>} : memref<1x8x8x128xf32, #tpu.memory_space<vmem>>, vector<1x1x8x128xf32>,
    %c2_i32_38 = arith.constant 2 : i32
    %c7_i32_39 = arith.constant 7 : i32
    %105 = arith.muli %arg0, %c7_i32_39 : i32
    %c2_i32_40 = arith.constant 2 : i32
    %106 = arith.muli %c2_i32_40, %arg0 : i32
    %c1_i32_41 = arith.constant 1 : i32
    %107 = arith.subi %c1_i32_41, %106 : i32
    %108 = arith.muli %107, %c2_i32_38 : i32
    %109 = arith.addi %105, %108 : i32
    %c0_42 = arith.constant 0 : index
    %110 = arith.index_cast %109 : i32 to index
    %c0_43 = arith.constant 0 : index
    %c0_44 = arith.constant 0 : index
    %111 = vector.load %arg2[%c0_42, %110, %c0_43, %c0_44] : memref<1x8x8x384xf32, #tpu.memory_space<vmem>>, vector<1x1x8x384xf32>
    %112 = vector.shape_cast %111 : vector<1x1x8x384xf32> to vector<8x384xf32>
    %113 = arith.truncf %100 : vector<8x128xf32> to vector<8x128xbf16>
    %cst_45 = arith.constant dense<0.000000e+00> : vector<8x384xf32>
    %114 = tpu.matmul %113, %4, %cst_45 {dimension_numbers = #tpu.dot_dimension_numbers<[1], [0], [0], [1], [0, 0, 1, 1], [], []>} : vector<8x128xbf16>, vector<128x384xbf16>, vector<8x384xf32> -> vector<8x384xf32>
    %115 = vector.extract_strided_slice %112 {offsets = [0, 0], sizes = [8, 128], strides = [1, 1]} : vector<8x384xf32> to vector<8x128xf32>
    %116 = vector.extract_strided_slice %114 {offsets = [0, 0], sizes = [8, 128], strides = [1, 1]} : vector<8x384xf32> to vector<8x128xf32>
    %117 = arith.addf %115, %116 : vector<8x128xf32>
    %118 = arith.negf %117 : vector<8x128xf32>
    %119 = math.exp %118 : vector<8x128xf32>
    %cst_46 = arith.constant 1.000000e+00 : f32
    %120 = vector.broadcast %cst_46 : f32 to vector<8x128xf32>
    %121 = arith.addf %120, %119 : vector<8x128xf32>
    %122 = arith.divf %120, %121 : vector<8x128xf32>
    %123 = vector.extract_strided_slice %112 {offsets = [0, 128], sizes = [8, 128], strides = [1, 1]} : vector<8x384xf32> to vector<8x128xf32>
    %124 = vector.extract_strided_slice %114 {offsets = [0, 128], sizes = [8, 128], strides = [1, 1]} : vector<8x384xf32> to vector<8x128xf32>
    %125 = arith.addf %123, %124 : vector<8x128xf32>
    %126 = arith.negf %125 : vector<8x128xf32>
    %127 = math.exp %126 : vector<8x128xf32>
    %cst_47 = arith.constant 1.000000e+00 : f32
    %128 = vector.broadcast %cst_47 : f32 to vector<8x128xf32>
    %129 = arith.addf %128, %127 : vector<8x128xf32>
    %130 = arith.divf %128, %129 : vector<8x128xf32>
    %131 = vector.extract_strided_slice %112 {offsets = [0, 256], sizes = [8, 128], strides = [1, 1]} : vector<8x384xf32> to vector<8x128xf32>
    %132 = vector.extract_strided_slice %114 {offsets = [0, 256], sizes = [8, 128], strides = [1, 1]} : vector<8x384xf32> to vector<8x128xf32>
    %133 = vector.broadcast %6 : vector<1x128xf32> to vector<8x128xf32>
    %134 = arith.addf %132, %133 : vector<8x128xf32>
    %135 = arith.mulf %122, %134 : vector<8x128xf32>
    %136 = arith.addf %131, %135 : vector<8x128xf32>
    %137 = math.tanh %136 : vector<8x128xf32>
    %cst_48 = arith.constant 1.000000e+00 : f32
    %138 = vector.broadcast %cst_48 : f32 to vector<8x128xf32>
    %139 = arith.subf %138, %130 : vector<8x128xf32>
    %140 = arith.mulf %139, %137 : vector<8x128xf32>
    %141 = arith.mulf %130, %100 : vector<8x128xf32>
    %142 = arith.addf %140, %141 : vector<8x128xf32>
    %143 = arith.addi %12, %109 : i32
    %c8_i32_49 = arith.constant 8 : i32
    %144 = arith.cmpi slt, %143, %c8_i32_49 : i32
    %145 = arith.select %144, %142, %100 : vector<8x128xf32>
    %c0_50 = arith.constant 0 : index
    %146 = arith.index_cast %109 : i32 to index
    %c0_51 = arith.constant 0 : index
    %c0_52 = arith.constant 0 : index
    %147 = vector.load %arg6[%c0_50, %146, %c0_51, %c0_52] : memref<1x8x8x128xf32, #tpu.memory_space<vmem>>, vector<1x1x8x128xf32>
    %148 = vector.shape_cast %147 : vector<1x1x8x128xf32> to vector<8x128xf32>
    %149 = vector.shape_cast %145 : vector<8x128xf32> to vector<1x1x8x128xf32>
    tpu.vector_store %arg6[%c0_50, %146, %c0_51, %c0_52], %149 {strides = array<i32>} : memref<1x8x8x128xf32, #tpu.memory_space<vmem>>, vector<1x1x8x128xf32>,
    %c3_i32 = arith.constant 3 : i32
    %c7_i32_53 = arith.constant 7 : i32
    %150 = arith.muli %arg0, %c7_i32_53 : i32
    %c2_i32_54 = arith.constant 2 : i32
    %151 = arith.muli %c2_i32_54, %arg0 : i32
    %c1_i32_55 = arith.constant 1 : i32
    %152 = arith.subi %c1_i32_55, %151 : i32
    %153 = arith.muli %152, %c3_i32 : i32
    %154 = arith.addi %150, %153 : i32
    %c0_56 = arith.constant 0 : index
    %155 = arith.index_cast %154 : i32 to index
    %c0_57 = arith.constant 0 : index
    %c0_58 = arith.constant 0 : index
    %156 = vector.load %arg2[%c0_56, %155, %c0_57, %c0_58] : memref<1x8x8x384xf32, #tpu.memory_space<vmem>>, vector<1x1x8x384xf32>
    %157 = vector.shape_cast %156 : vector<1x1x8x384xf32> to vector<8x384xf32>
    %158 = arith.truncf %145 : vector<8x128xf32> to vector<8x128xbf16>
    %cst_59 = arith.constant dense<0.000000e+00> : vector<8x384xf32>
    %159 = tpu.matmul %158, %4, %cst_59 {dimension_numbers = #tpu.dot_dimension_numbers<[1], [0], [0], [1], [0, 0, 1, 1], [], []>} : vector<8x128xbf16>, vector<128x384xbf16>, vector<8x384xf32> -> vector<8x384xf32>
    %160 = vector.extract_strided_slice %157 {offsets = [0, 0], sizes = [8, 128], strides = [1, 1]} : vector<8x384xf32> to vector<8x128xf32>
    %161 = vector.extract_strided_slice %159 {offsets = [0, 0], sizes = [8, 128], strides = [1, 1]} : vector<8x384xf32> to vector<8x128xf32>
    %162 = arith.addf %160, %161 : vector<8x128xf32>
    %163 = arith.negf %162 : vector<8x128xf32>
    %164 = math.exp %163 : vector<8x128xf32>
    %cst_60 = arith.constant 1.000000e+00 : f32
    %165 = vector.broadcast %cst_60 : f32 to vector<8x128xf32>
    %166 = arith.addf %165, %164 : vector<8x128xf32>
    %167 = arith.divf %165, %166 : vector<8x128xf32>
    %168 = vector.extract_strided_slice %157 {offsets = [0, 128], sizes = [8, 128], strides = [1, 1]} : vector<8x384xf32> to vector<8x128xf32>
    %169 = vector.extract_strided_slice %159 {offsets = [0, 128], sizes = [8, 128], strides = [1, 1]} : vector<8x384xf32> to vector<8x128xf32>
    %170 = arith.addf %168, %169 : vector<8x128xf32>
    %171 = arith.negf %170 : vector<8x128xf32>
    %172 = math.exp %171 : vector<8x128xf32>
    %cst_61 = arith.constant 1.000000e+00 : f32
    %173 = vector.broadcast %cst_61 : f32 to vector<8x128xf32>
    %174 = arith.addf %173, %172 : vector<8x128xf32>
    %175 = arith.divf %173, %174 : vector<8x128xf32>
    %176 = vector.extract_strided_slice %157 {offsets = [0, 256], sizes = [8, 128], strides = [1, 1]} : vector<8x384xf32> to vector<8x128xf32>
    %177 = vector.extract_strided_slice %159 {offsets = [0, 256], sizes = [8, 128], strides = [1, 1]} : vector<8x384xf32> to vector<8x128xf32>
    %178 = vector.broadcast %6 : vector<1x128xf32> to vector<8x128xf32>
    %179 = arith.addf %177, %178 : vector<8x128xf32>
    %180 = arith.mulf %167, %179 : vector<8x128xf32>
    %181 = arith.addf %176, %180 : vector<8x128xf32>
    %182 = math.tanh %181 : vector<8x128xf32>
    %cst_62 = arith.constant 1.000000e+00 : f32
    %183 = vector.broadcast %cst_62 : f32 to vector<8x128xf32>
    %184 = arith.subf %183, %175 : vector<8x128xf32>
    %185 = arith.mulf %184, %182 : vector<8x128xf32>
    %186 = arith.mulf %175, %145 : vector<8x128xf32>
    %187 = arith.addf %185, %186 : vector<8x128xf32>
    %188 = arith.addi %12, %154 : i32
    %c8_i32_63 = arith.constant 8 : i32
    %189 = arith.cmpi slt, %188, %c8_i32_63 : i32
    %190 = arith.select %189, %187, %145 : vector<8x128xf32>
    %c0_64 = arith.constant 0 : index
    %191 = arith.index_cast %154 : i32 to index
    %c0_65 = arith.constant 0 : index
    %c0_66 = arith.constant 0 : index
    %192 = vector.load %arg6[%c0_64, %191, %c0_65, %c0_66] : memref<1x8x8x128xf32, #tpu.memory_space<vmem>>, vector<1x1x8x128xf32>
    %193 = vector.shape_cast %192 : vector<1x1x8x128xf32> to vector<8x128xf32>
    %194 = vector.shape_cast %190 : vector<8x128xf32> to vector<1x1x8x128xf32>
    tpu.vector_store %arg6[%c0_64, %191, %c0_65, %c0_66], %194 {strides = array<i32>} : memref<1x8x8x128xf32, #tpu.memory_space<vmem>>, vector<1x1x8x128xf32>,
    %c4_i32 = arith.constant 4 : i32
    %c7_i32_67 = arith.constant 7 : i32
    %195 = arith.muli %arg0, %c7_i32_67 : i32
    %c2_i32_68 = arith.constant 2 : i32
    %196 = arith.muli %c2_i32_68, %arg0 : i32
    %c1_i32_69 = arith.constant 1 : i32
    %197 = arith.subi %c1_i32_69, %196 : i32
    %198 = arith.muli %197, %c4_i32 : i32
    %199 = arith.addi %195, %198 : i32
    %c0_70 = arith.constant 0 : index
    %200 = arith.index_cast %199 : i32 to index
    %c0_71 = arith.constant 0 : index
    %c0_72 = arith.constant 0 : index
    %201 = vector.load %arg2[%c0_70, %200, %c0_71, %c0_72] : memref<1x8x8x384xf32, #tpu.memory_space<vmem>>, vector<1x1x8x384xf32>
    %202 = vector.shape_cast %201 : vector<1x1x8x384xf32> to vector<8x384xf32>
    %203 = arith.truncf %190 : vector<8x128xf32> to vector<8x128xbf16>
    %cst_73 = arith.constant dense<0.000000e+00> : vector<8x384xf32>
    %204 = tpu.matmul %203, %4, %cst_73 {dimension_numbers = #tpu.dot_dimension_numbers<[1], [0], [0], [1], [0, 0, 1, 1], [], []>} : vector<8x128xbf16>, vector<128x384xbf16>, vector<8x384xf32> -> vector<8x384xf32>
    %205 = vector.extract_strided_slice %202 {offsets = [0, 0], sizes = [8, 128], strides = [1, 1]} : vector<8x384xf32> to vector<8x128xf32>
    %206 = vector.extract_strided_slice %204 {offsets = [0, 0], sizes = [8, 128], strides = [1, 1]} : vector<8x384xf32> to vector<8x128xf32>
    %207 = arith.addf %205, %206 : vector<8x128xf32>
    %208 = arith.negf %207 : vector<8x128xf32>
    %209 = math.exp %208 : vector<8x128xf32>
    %cst_74 = arith.constant 1.000000e+00 : f32
    %210 = vector.broadcast %cst_74 : f32 to vector<8x128xf32>
    %211 = arith.addf %210, %209 : vector<8x128xf32>
    %212 = arith.divf %210, %211 : vector<8x128xf32>
    %213 = vector.extract_strided_slice %202 {offsets = [0, 128], sizes = [8, 128], strides = [1, 1]} : vector<8x384xf32> to vector<8x128xf32>
    %214 = vector.extract_strided_slice %204 {offsets = [0, 128], sizes = [8, 128], strides = [1, 1]} : vector<8x384xf32> to vector<8x128xf32>
    %215 = arith.addf %213, %214 : vector<8x128xf32>
    %216 = arith.negf %215 : vector<8x128xf32>
    %217 = math.exp %216 : vector<8x128xf32>
    %cst_75 = arith.constant 1.000000e+00 : f32
    %218 = vector.broadcast %cst_75 : f32 to vector<8x128xf32>
    %219 = arith.addf %218, %217 : vector<8x128xf32>
    %220 = arith.divf %218, %219 : vector<8x128xf32>
    %221 = vector.extract_strided_slice %202 {offsets = [0, 256], sizes = [8, 128], strides = [1, 1]} : vector<8x384xf32> to vector<8x128xf32>
    %222 = vector.extract_strided_slice %204 {offsets = [0, 256], sizes = [8, 128], strides = [1, 1]} : vector<8x384xf32> to vector<8x128xf32>
    %223 = vector.broadcast %6 : vector<1x128xf32> to vector<8x128xf32>
    %224 = arith.addf %222, %223 : vector<8x128xf32>
    %225 = arith.mulf %212, %224 : vector<8x128xf32>
    %226 = arith.addf %221, %225 : vector<8x128xf32>
    %227 = math.tanh %226 : vector<8x128xf32>
    %cst_76 = arith.constant 1.000000e+00 : f32
    %228 = vector.broadcast %cst_76 : f32 to vector<8x128xf32>
    %229 = arith.subf %228, %220 : vector<8x128xf32>
    %230 = arith.mulf %229, %227 : vector<8x128xf32>
    %231 = arith.mulf %220, %190 : vector<8x128xf32>
    %232 = arith.addf %230, %231 : vector<8x128xf32>
    %233 = arith.addi %12, %199 : i32
    %c8_i32_77 = arith.constant 8 : i32
    %234 = arith.cmpi slt, %233, %c8_i32_77 : i32
    %235 = arith.select %234, %232, %190 : vector<8x128xf32>
    %c0_78 = arith.constant 0 : index
    %236 = arith.index_cast %199 : i32 to index
    %c0_79 = arith.constant 0 : index
    %c0_80 = arith.constant 0 : index
    %237 = vector.load %arg6[%c0_78, %236, %c0_79, %c0_80] : memref<1x8x8x128xf32, #tpu.memory_space<vmem>>, vector<1x1x8x128xf32>
    %238 = vector.shape_cast %237 : vector<1x1x8x128xf32> to vector<8x128xf32>
    %239 = vector.shape_cast %235 : vector<8x128xf32> to vector<1x1x8x128xf32>
    tpu.vector_store %arg6[%c0_78, %236, %c0_79, %c0_80], %239 {strides = array<i32>} : memref<1x8x8x128xf32, #tpu.memory_space<vmem>>, vector<1x1x8x128xf32>,
    %c5_i32 = arith.constant 5 : i32
    %c7_i32_81 = arith.constant 7 : i32
    %240 = arith.muli %arg0, %c7_i32_81 : i32
    %c2_i32_82 = arith.constant 2 : i32
    %241 = arith.muli %c2_i32_82, %arg0 : i32
    %c1_i32_83 = arith.constant 1 : i32
    %242 = arith.subi %c1_i32_83, %241 : i32
    %243 = arith.muli %242, %c5_i32 : i32
    %244 = arith.addi %240, %243 : i32
    %c0_84 = arith.constant 0 : index
    %245 = arith.index_cast %244 : i32 to index
    %c0_85 = arith.constant 0 : index
    %c0_86 = arith.constant 0 : index
    %246 = vector.load %arg2[%c0_84, %245, %c0_85, %c0_86] : memref<1x8x8x384xf32, #tpu.memory_space<vmem>>, vector<1x1x8x384xf32>
    %247 = vector.shape_cast %246 : vector<1x1x8x384xf32> to vector<8x384xf32>
    %248 = arith.truncf %235 : vector<8x128xf32> to vector<8x128xbf16>
    %cst_87 = arith.constant dense<0.000000e+00> : vector<8x384xf32>
    %249 = tpu.matmul %248, %4, %cst_87 {dimension_numbers = #tpu.dot_dimension_numbers<[1], [0], [0], [1], [0, 0, 1, 1], [], []>} : vector<8x128xbf16>, vector<128x384xbf16>, vector<8x384xf32> -> vector<8x384xf32>
    %250 = vector.extract_strided_slice %247 {offsets = [0, 0], sizes = [8, 128], strides = [1, 1]} : vector<8x384xf32> to vector<8x128xf32>
    %251 = vector.extract_strided_slice %249 {offsets = [0, 0], sizes = [8, 128], strides = [1, 1]} : vector<8x384xf32> to vector<8x128xf32>
    %252 = arith.addf %250, %251 : vector<8x128xf32>
    %253 = arith.negf %252 : vector<8x128xf32>
    %254 = math.exp %253 : vector<8x128xf32>
    %cst_88 = arith.constant 1.000000e+00 : f32
    %255 = vector.broadcast %cst_88 : f32 to vector<8x128xf32>
    %256 = arith.addf %255, %254 : vector<8x128xf32>
    %257 = arith.divf %255, %256 : vector<8x128xf32>
    %258 = vector.extract_strided_slice %247 {offsets = [0, 128], sizes = [8, 128], strides = [1, 1]} : vector<8x384xf32> to vector<8x128xf32>
    %259 = vector.extract_strided_slice %249 {offsets = [0, 128], sizes = [8, 128], strides = [1, 1]} : vector<8x384xf32> to vector<8x128xf32>
    %260 = arith.addf %258, %259 : vector<8x128xf32>
    %261 = arith.negf %260 : vector<8x128xf32>
    %262 = math.exp %261 : vector<8x128xf32>
    %cst_89 = arith.constant 1.000000e+00 : f32
    %263 = vector.broadcast %cst_89 : f32 to vector<8x128xf32>
    %264 = arith.addf %263, %262 : vector<8x128xf32>
    %265 = arith.divf %263, %264 : vector<8x128xf32>
    %266 = vector.extract_strided_slice %247 {offsets = [0, 256], sizes = [8, 128], strides = [1, 1]} : vector<8x384xf32> to vector<8x128xf32>
    %267 = vector.extract_strided_slice %249 {offsets = [0, 256], sizes = [8, 128], strides = [1, 1]} : vector<8x384xf32> to vector<8x128xf32>
    %268 = vector.broadcast %6 : vector<1x128xf32> to vector<8x128xf32>
    %269 = arith.addf %267, %268 : vector<8x128xf32>
    %270 = arith.mulf %257, %269 : vector<8x128xf32>
    %271 = arith.addf %266, %270 : vector<8x128xf32>
    %272 = math.tanh %271 : vector<8x128xf32>
    %cst_90 = arith.constant 1.000000e+00 : f32
    %273 = vector.broadcast %cst_90 : f32 to vector<8x128xf32>
    %274 = arith.subf %273, %265 : vector<8x128xf32>
    %275 = arith.mulf %274, %272 : vector<8x128xf32>
    %276 = arith.mulf %265, %235 : vector<8x128xf32>
    %277 = arith.addf %275, %276 : vector<8x128xf32>
    %278 = arith.addi %12, %244 : i32
    %c8_i32_91 = arith.constant 8 : i32
    %279 = arith.cmpi slt, %278, %c8_i32_91 : i32
    %280 = arith.select %279, %277, %235 : vector<8x128xf32>
    %c0_92 = arith.constant 0 : index
    %281 = arith.index_cast %244 : i32 to index
    %c0_93 = arith.constant 0 : index
    %c0_94 = arith.constant 0 : index
    %282 = vector.load %arg6[%c0_92, %281, %c0_93, %c0_94] : memref<1x8x8x128xf32, #tpu.memory_space<vmem>>, vector<1x1x8x128xf32>
    %283 = vector.shape_cast %282 : vector<1x1x8x128xf32> to vector<8x128xf32>
    %284 = vector.shape_cast %280 : vector<8x128xf32> to vector<1x1x8x128xf32>
    tpu.vector_store %arg6[%c0_92, %281, %c0_93, %c0_94], %284 {strides = array<i32>} : memref<1x8x8x128xf32, #tpu.memory_space<vmem>>, vector<1x1x8x128xf32>,
    %c6_i32 = arith.constant 6 : i32
    %c7_i32_95 = arith.constant 7 : i32
    %285 = arith.muli %arg0, %c7_i32_95 : i32
    %c2_i32_96 = arith.constant 2 : i32
    %286 = arith.muli %c2_i32_96, %arg0 : i32
    %c1_i32_97 = arith.constant 1 : i32
    %287 = arith.subi %c1_i32_97, %286 : i32
    %288 = arith.muli %287, %c6_i32 : i32
    %289 = arith.addi %285, %288 : i32
    %c0_98 = arith.constant 0 : index
    %290 = arith.index_cast %289 : i32 to index
    %c0_99 = arith.constant 0 : index
    %c0_100 = arith.constant 0 : index
    %291 = vector.load %arg2[%c0_98, %290, %c0_99, %c0_100] : memref<1x8x8x384xf32, #tpu.memory_space<vmem>>, vector<1x1x8x384xf32>
    %292 = vector.shape_cast %291 : vector<1x1x8x384xf32> to vector<8x384xf32>
    %293 = arith.truncf %280 : vector<8x128xf32> to vector<8x128xbf16>
    %cst_101 = arith.constant dense<0.000000e+00> : vector<8x384xf32>
    %294 = tpu.matmul %293, %4, %cst_101 {dimension_numbers = #tpu.dot_dimension_numbers<[1], [0], [0], [1], [0, 0, 1, 1], [], []>} : vector<8x128xbf16>, vector<128x384xbf16>, vector<8x384xf32> -> vector<8x384xf32>
    %295 = vector.extract_strided_slice %292 {offsets = [0, 0], sizes = [8, 128], strides = [1, 1]} : vector<8x384xf32> to vector<8x128xf32>
    %296 = vector.extract_strided_slice %294 {offsets = [0, 0], sizes = [8, 128], strides = [1, 1]} : vector<8x384xf32> to vector<8x128xf32>
    %297 = arith.addf %295, %296 : vector<8x128xf32>
    %298 = arith.negf %297 : vector<8x128xf32>
    %299 = math.exp %298 : vector<8x128xf32>
    %cst_102 = arith.constant 1.000000e+00 : f32
    %300 = vector.broadcast %cst_102 : f32 to vector<8x128xf32>
    %301 = arith.addf %300, %299 : vector<8x128xf32>
    %302 = arith.divf %300, %301 : vector<8x128xf32>
    %303 = vector.extract_strided_slice %292 {offsets = [0, 128], sizes = [8, 128], strides = [1, 1]} : vector<8x384xf32> to vector<8x128xf32>
    %304 = vector.extract_strided_slice %294 {offsets = [0, 128], sizes = [8, 128], strides = [1, 1]} : vector<8x384xf32> to vector<8x128xf32>
    %305 = arith.addf %303, %304 : vector<8x128xf32>
    %306 = arith.negf %305 : vector<8x128xf32>
    %307 = math.exp %306 : vector<8x128xf32>
    %cst_103 = arith.constant 1.000000e+00 : f32
    %308 = vector.broadcast %cst_103 : f32 to vector<8x128xf32>
    %309 = arith.addf %308, %307 : vector<8x128xf32>
    %310 = arith.divf %308, %309 : vector<8x128xf32>
    %311 = vector.extract_strided_slice %292 {offsets = [0, 256], sizes = [8, 128], strides = [1, 1]} : vector<8x384xf32> to vector<8x128xf32>
    %312 = vector.extract_strided_slice %294 {offsets = [0, 256], sizes = [8, 128], strides = [1, 1]} : vector<8x384xf32> to vector<8x128xf32>
    %313 = vector.broadcast %6 : vector<1x128xf32> to vector<8x128xf32>
    %314 = arith.addf %312, %313 : vector<8x128xf32>
    %315 = arith.mulf %302, %314 : vector<8x128xf32>
    %316 = arith.addf %311, %315 : vector<8x128xf32>
    %317 = math.tanh %316 : vector<8x128xf32>
    %cst_104 = arith.constant 1.000000e+00 : f32
    %318 = vector.broadcast %cst_104 : f32 to vector<8x128xf32>
    %319 = arith.subf %318, %310 : vector<8x128xf32>
    %320 = arith.mulf %319, %317 : vector<8x128xf32>
    %321 = arith.mulf %310, %280 : vector<8x128xf32>
    %322 = arith.addf %320, %321 : vector<8x128xf32>
    %323 = arith.addi %12, %289 : i32
    %c8_i32_105 = arith.constant 8 : i32
    %324 = arith.cmpi slt, %323, %c8_i32_105 : i32
    %325 = arith.select %324, %322, %280 : vector<8x128xf32>
    %c0_106 = arith.constant 0 : index
    %326 = arith.index_cast %289 : i32 to index
    %c0_107 = arith.constant 0 : index
    %c0_108 = arith.constant 0 : index
    %327 = vector.load %arg6[%c0_106, %326, %c0_107, %c0_108] : memref<1x8x8x128xf32, #tpu.memory_space<vmem>>, vector<1x1x8x128xf32>
    %328 = vector.shape_cast %327 : vector<1x1x8x128xf32> to vector<8x128xf32>
    %329 = vector.shape_cast %325 : vector<8x128xf32> to vector<1x1x8x128xf32>
    tpu.vector_store %arg6[%c0_106, %326, %c0_107, %c0_108], %329 {strides = array<i32>} : memref<1x8x8x128xf32, #tpu.memory_space<vmem>>, vector<1x1x8x128xf32>,
    %c7_i32_109 = arith.constant 7 : i32
    %c7_i32_110 = arith.constant 7 : i32
    %330 = arith.muli %arg0, %c7_i32_110 : i32
    %c2_i32_111 = arith.constant 2 : i32
    %331 = arith.muli %c2_i32_111, %arg0 : i32
    %c1_i32_112 = arith.constant 1 : i32
    %332 = arith.subi %c1_i32_112, %331 : i32
    %333 = arith.muli %332, %c7_i32_109 : i32
    %334 = arith.addi %330, %333 : i32
    %c0_113 = arith.constant 0 : index
    %335 = arith.index_cast %334 : i32 to index
    %c0_114 = arith.constant 0 : index
    %c0_115 = arith.constant 0 : index
    %336 = vector.load %arg2[%c0_113, %335, %c0_114, %c0_115] : memref<1x8x8x384xf32, #tpu.memory_space<vmem>>, vector<1x1x8x384xf32>
    %337 = vector.shape_cast %336 : vector<1x1x8x384xf32> to vector<8x384xf32>
    %338 = arith.truncf %325 : vector<8x128xf32> to vector<8x128xbf16>
    %cst_116 = arith.constant dense<0.000000e+00> : vector<8x384xf32>
    %339 = tpu.matmul %338, %4, %cst_116 {dimension_numbers = #tpu.dot_dimension_numbers<[1], [0], [0], [1], [0, 0, 1, 1], [], []>} : vector<8x128xbf16>, vector<128x384xbf16>, vector<8x384xf32> -> vector<8x384xf32>
    %340 = vector.extract_strided_slice %337 {offsets = [0, 0], sizes = [8, 128], strides = [1, 1]} : vector<8x384xf32> to vector<8x128xf32>
    %341 = vector.extract_strided_slice %339 {offsets = [0, 0], sizes = [8, 128], strides = [1, 1]} : vector<8x384xf32> to vector<8x128xf32>
    %342 = arith.addf %340, %341 : vector<8x128xf32>
    %343 = arith.negf %342 : vector<8x128xf32>
    %344 = math.exp %343 : vector<8x128xf32>
    %cst_117 = arith.constant 1.000000e+00 : f32
    %345 = vector.broadcast %cst_117 : f32 to vector<8x128xf32>
    %346 = arith.addf %345, %344 : vector<8x128xf32>
    %347 = arith.divf %345, %346 : vector<8x128xf32>
    %348 = vector.extract_strided_slice %337 {offsets = [0, 128], sizes = [8, 128], strides = [1, 1]} : vector<8x384xf32> to vector<8x128xf32>
    %349 = vector.extract_strided_slice %339 {offsets = [0, 128], sizes = [8, 128], strides = [1, 1]} : vector<8x384xf32> to vector<8x128xf32>
    %350 = arith.addf %348, %349 : vector<8x128xf32>
    %351 = arith.negf %350 : vector<8x128xf32>
    %352 = math.exp %351 : vector<8x128xf32>
    %cst_118 = arith.constant 1.000000e+00 : f32
    %353 = vector.broadcast %cst_118 : f32 to vector<8x128xf32>
    %354 = arith.addf %353, %352 : vector<8x128xf32>
    %355 = arith.divf %353, %354 : vector<8x128xf32>
    %356 = vector.extract_strided_slice %337 {offsets = [0, 256], sizes = [8, 128], strides = [1, 1]} : vector<8x384xf32> to vector<8x128xf32>
    %357 = vector.extract_strided_slice %339 {offsets = [0, 256], sizes = [8, 128], strides = [1, 1]} : vector<8x384xf32> to vector<8x128xf32>
    %358 = vector.broadcast %6 : vector<1x128xf32> to vector<8x128xf32>
    %359 = arith.addf %357, %358 : vector<8x128xf32>
    %360 = arith.mulf %347, %359 : vector<8x128xf32>
    %361 = arith.addf %356, %360 : vector<8x128xf32>
    %362 = math.tanh %361 : vector<8x128xf32>
    %cst_119 = arith.constant 1.000000e+00 : f32
    %363 = vector.broadcast %cst_119 : f32 to vector<8x128xf32>
    %364 = arith.subf %363, %355 : vector<8x128xf32>
    %365 = arith.mulf %364, %362 : vector<8x128xf32>
    %366 = arith.mulf %355, %325 : vector<8x128xf32>
    %367 = arith.addf %365, %366 : vector<8x128xf32>
    %368 = arith.addi %12, %334 : i32
    %c8_i32_120 = arith.constant 8 : i32
    %369 = arith.cmpi slt, %368, %c8_i32_120 : i32
    %370 = arith.select %369, %367, %325 : vector<8x128xf32>
    %c0_121 = arith.constant 0 : index
    %371 = arith.index_cast %334 : i32 to index
    %c0_122 = arith.constant 0 : index
    %c0_123 = arith.constant 0 : index
    %372 = vector.load %arg6[%c0_121, %371, %c0_122, %c0_123] : memref<1x8x8x128xf32, #tpu.memory_space<vmem>>, vector<1x1x8x128xf32>
    %373 = vector.shape_cast %372 : vector<1x1x8x128xf32> to vector<8x128xf32>
    %374 = vector.shape_cast %370 : vector<8x128xf32> to vector<1x1x8x128xf32>
    tpu.vector_store %arg6[%c0_121, %371, %c0_122, %c0_123], %374 {strides = array<i32>} : memref<1x8x8x128xf32, #tpu.memory_space<vmem>>, vector<1x1x8x128xf32>,
    %c8_i32_124 = arith.constant 8 : i32
    %c0_125 = arith.constant 0 : index
    %c0_126 = arith.constant 0 : index
    %c0_127 = arith.constant 0 : index
    %375 = vector.load %arg7[%c0_125, %c0_126, %c0_127] : memref<1x8x128xf32, #tpu.memory_space<vmem>>, vector<1x8x128xf32>
    %376 = vector.shape_cast %375 : vector<1x8x128xf32> to vector<8x128xf32>
    %377 = vector.shape_cast %370 : vector<8x128xf32> to vector<1x8x128xf32>
    tpu.vector_store %arg7[%c0_125, %c0_126, %c0_127], %377 {strides = array<i32>} : memref<1x8x128xf32, #tpu.memory_space<vmem>>, vector<1x8x128xf32>,
    return
  }
  func.func @transform_0(%arg0: i32, %arg1: i32) -> (i32, i32, i32, i32) {
    %c0_i32 = arith.constant 0 : i32
    %0 = arith.muli %arg0, %c0_i32 : i32
    %c2_i32 = arith.constant 2 : i32
    %1 = arith.muli %c2_i32, %arg0 : i32
    %c1_i32 = arith.constant 1 : i32
    %2 = arith.subi %c1_i32, %1 : i32
    %3 = arith.muli %2, %arg1 : i32
    %4 = arith.addi %0, %3 : i32
    %c0_i32_0 = arith.constant 0 : i32
    %c0_i32_1 = arith.constant 0 : i32
    %c0_i32_2 = arith.constant 0 : i32
    return %arg0, %4, %c0_i32_0, %c0_i32_1 : i32, i32, i32, i32
  }
  func.func @transform_1(%arg0: i32, %arg1: i32) -> (i32, i32, i32) {
    %c0_i32 = arith.constant 0 : i32
    %c0_i32_0 = arith.constant 0 : i32
    %c0_i32_1 = arith.constant 0 : i32
    return %arg0, %c0_i32, %c0_i32_0 : i32, i32, i32
  }
  func.func @transform_2(%arg0: i32, %arg1: i32) -> (i32, i32, i32) {
    %c0_i32 = arith.constant 0 : i32
    %c0_i32_0 = arith.constant 0 : i32
    %c0_i32_1 = arith.constant 0 : i32
    return %arg0, %c0_i32, %c0_i32_0 : i32, i32, i32
  }
  func.func @transform_3(%arg0: i32, %arg1: i32) -> (i32, i32, i32) {
    %c0_i32 = arith.constant 0 : i32
    %c0_i32_0 = arith.constant 0 : i32
    %c0_i32_1 = arith.constant 0 : i32
    return %arg0, %c0_i32, %c0_i32_0 : i32, i32, i32
  }
  func.func @transform_4(%arg0: i32, %arg1: i32) -> (i32, i32, i32, i32) {
    %c0_i32 = arith.constant 0 : i32
    %0 = arith.muli %arg0, %c0_i32 : i32
    %c2_i32 = arith.constant 2 : i32
    %1 = arith.muli %c2_i32, %arg0 : i32
    %c1_i32 = arith.constant 1 : i32
    %2 = arith.subi %c1_i32, %1 : i32
    %3 = arith.muli %2, %arg1 : i32
    %4 = arith.addi %0, %3 : i32
    %c0_i32_0 = arith.constant 0 : i32
    %c0_i32_1 = arith.constant 0 : i32
    %c0_i32_2 = arith.constant 0 : i32
    return %arg0, %4, %c0_i32_0, %c0_i32_1 : i32, i32, i32, i32
  }
  func.func @transform_5(%arg0: i32, %arg1: i32) -> (i32, i32, i32) {
    %c0_i32 = arith.constant 0 : i32
    %c0_i32_0 = arith.constant 0 : i32
    %c0_i32_1 = arith.constant 0 : i32
    return %arg0, %c0_i32, %c0_i32_0 : i32, i32, i32
  }
}

</mosaic_0001>

<llo_original>
// kernel: tpu_custom_call.1
$region0: #{tpu_custom_call.1}
  #allocation0 [shape = 'u32[]', space=smem, size = 0x4, offset = 0x4, fixed_abs, tag = 'smem constant byte address 0x4 - core index']
  #allocation1 [shape = 'u32[144,128]{1,0:T(1,128)}', space=vmem, size = 0x12000, scoped, tag = 'internal scratch']
  %s0 = inlined_call_operand.hbm [shape: f32[2,8,8,384], index: 0, kind: input, shape index: {}]
  %s1 = inlined_call_operand.hbm [shape: bf16[2,128,384], index: 1, kind: input, shape index: {}]
  %s2 = inlined_call_operand.vmem [shape: f32[2,1,128], index: 2, kind: input, shape index: {}]
  %s3 = inlined_call_operand.hbm [shape: f32[2,8,128], index: 3, kind: input, shape index: {}]
  %s4 = inlined_call_operand.hbm [shape: f32[2,8,8,128], index: 4, kind: output, shape index: {0}]
  %s5 = inlined_call_operand.hbm [shape: f32[2,8,128], index: 5, kind: output, shape index: {1}]
  %6 = xla_tuple %s4, %s5
  %s7 = sld [smem:[#allocation0]]
  $region73: #{tpu_custom_call.1} parent=0
    _
  %s9 = ssub.s32 1, %s7
  %s10 = scalar_select 0, %s9, %s7
  $region1: #{tpu_custom_call.1} parent=0
    #allocation2 [shape = 'u8[196608]{0}', space=vmem, size = 0x30000, scoped, tag = 'input window, operand 0']
    #allocation3 [shape = 's32[2]{0}', space=sflag, size = 0x8, scoped, tag = 'scoped memory for tpu_custom_call.1']
    #allocation4 [shape = 's32[2]{0}', space=sflag, size = 0x8, scoped, tag = 'scoped memory for tpu_custom_call.1']
    #allocation5 [shape = 'u8[196608]{0}', space=vmem, size = 0x30000, scoped, tag = 'input window, operand 1']
    #allocation6 [shape = 's32[2]{0}', space=sflag, size = 0x8, scoped, tag = 'scoped memory for tpu_custom_call.1']
    #allocation7 [shape = 'u8[8192]{0}', space=vmem, size = 0x2000, scoped, tag = 'input window, operand 3']
    #allocation8 [shape = 'u8[65536]{0}', space=vmem, size = 0x10000, scoped, tag = 'output window, operand 0']
    #allocation9 [shape = 'u8[8192]{0}', space=vmem, size = 0x2000, scoped, tag = 'output window, operand 1']
    #allocation10 [shape = 's32[2]{0}', space=sflag, size = 0x8, scoped, tag = 'scoped memory for tpu_custom_call.1']
    %11 = vsyncpa [#allocation3], 0
    %s12 = scalar_lea.sflag [#allocation3], 1
    %13 = vsyncpa %s12, 0
    %14 = vsyncpa [#allocation6], 0
    %s15 = scalar_lea.sflag [#allocation6], 1
    %16 = vsyncpa %s15, 0
    %17 = vsyncpa [#allocation4], 0
    %s18 = scalar_lea.sflag [#allocation4], 1
    %19 = vsyncpa %s18, 0
    %20 = vsyncpa [#allocation10], 0
    %s21 = scalar_lea.sflag [#allocation10], 1
    %22 = vsyncpa %s21, 0
    loop: start=0, step=1, limit=4
    $region2: #{tpu_custom_call.1} parent=1 // loop_pre_header
      _
    $region3: #{tpu_custom_call.1} parent=1 // loop_header
      %s24 = sphi 0, %s28
      %p25 = scmp.ge.s32.totalorder %s24, 4
      %s31 = sphi 0, %s43
      %s32 = sphi 0, %s39
      %s33 = sphi 0, %s31
      %s34 = sphi 0, %s32
      %s35 = sphi 0, %s33
      %s36 = sphi 0, %s34
      %s54 = sphi 0, %s56
      %s57 = sphi 0, %s54
      %s58 = sphi 0, %s57
      %s74 = sphi 0, %s58
      %s80 = sphi 0, %s82
      %s83 = sphi 0, %s80
      %s84 = sphi 0, %s83
      %s100 = sphi 0, %s84
      %s106 = sphi 0, %s108
      %s109 = sphi 0, %s106
      %s110 = sphi 0, %s109
      %s126 = sphi 0, %s110
      %s132 = sphi 0, %s134
      %s135 = sphi 0, %s132
      %s136 = sphi 0, %s135
      %s152 = sphi 0, %s136
      %s166 = sphi 0, %s168
      %s169 = sphi 0, %s166
      %s170 = sphi 0, %s169
      %s186 = sphi 0, %s170
      %s192 = sphi 0, %s194
      %s195 = sphi 0, %s192
      %s196 = sphi 0, %s195
      %s212 = sphi 0, %s196
    $region4: #{tpu_custom_call.1} parent=1 // loop_header_branch
      %27 = sbr.rel (%p25) target = $region8
    $region5: #{tpu_custom_call.1} parent=1 // loop_body
      %s29 = ssub.s32 %s24, 1
      %s30 = ssub.s32 %s24, 2
      %s37 = sadd.s32 1, %s32
      %p38 = scmp.ge.s32.totalorder %s37, 1
      %s39 = scalar_select %p38, 0, %s37
      %s40 = sadd.s32 1, %s31
      %s41 = scalar_select %p38, %s40, %s31
      %p42 = scmp.ge.s32.totalorder %s41, 2
      %s43 = scalar_select %p42, 0, %s41
      %s44 = smul.u32 %s31, 2
      %s45 = ssub.s32 1, %s44
      %s46 = smul.u32 %s45, %s32
      %s47 = smul.u32 %s43, 2
      %s48 = ssub.s32 1, %s47
      %s49 = smul.u32 %s48, %s39
      %s50 = ssub.s32 %s31, %s43
      %s51 = ssub.s32 %s46, %s49
      %s52 = sor.u32 %s50, %s51
      %p53 = scmp.eq.s32.totalorder %s52, 0
      %s55 = sadd.s32 %s54, 1
      %s56 = scalar_select %p53, %s54, %s55
      %p59 = pneg %p53
      %p60 = scmp.eq.s32.totalorder %s24, 1
      %p61 = por %p59, %p60
      %p62 = scmp.ne.s32.totalorder %s54, %s57
      %p63 = scmp.eq.s32.totalorder %s24, 0
      %p64 = por %p62, %p63
      %p65 = scmp.ne.s32.totalorder %s54, %s57
      %p66 = scmp.eq.s32.totalorder %s29, 1
      %p67 = por %p65, %p66
      %p68 = scmp.ne.s32.totalorder %s57, %s58
      %p69 = scmp.eq.s32.totalorder %s29, 0
      %p70 = por %p68, %p69
      %p71 = scmp.ne.s32.totalorder %s57, %s58
      %p72 = scmp.eq.s32.totalorder %s30, 1
      %p73 = por %p71, %p72
      %p75 = scmp.ne.s32.totalorder %s58, %s74
      %p76 = scmp.eq.s32.totalorder %s30, 0
      %p77 = por %p75, %p76
      %s78 = ssub.s32 %s31, %s43
      %p79 = scmp.eq.s32.totalorder %s78, 0
      %s81 = sadd.s32 %s80, 1
      %s82 = scalar_select %p79, %s80, %s81
      %p85 = pneg %p79
      %p86 = scmp.eq.s32.totalorder %s24, 1
      %p87 = por %p85, %p86
      %p88 = scmp.ne.s32.totalorder %s80, %s83
      %p89 = scmp.eq.s32.totalorder %s24, 0
      %p90 = por %p88, %p89
      %p91 = scmp.ne.s32.totalorder %s80, %s83
      %p92 = scmp.eq.s32.totalorder %s29, 1
      %p93 = por %p91, %p92
      %p94 = scmp.ne.s32.totalorder %s83, %s84
      %p95 = scmp.eq.s32.totalorder %s29, 0
      %p96 = por %p94, %p95
      %p97 = scmp.ne.s32.totalorder %s83, %s84
      %p98 = scmp.eq.s32.totalorder %s30, 1
      %p99 = por %p97, %p98
      %p101 = scmp.ne.s32.totalorder %s84, %s100
      %p102 = scmp.eq.s32.totalorder %s30, 0
      %p103 = por %p101, %p102
      %s104 = ssub.s32 %s31, %s43
      %p105 = scmp.eq.s32.totalorder %s104, 0
      %s107 = sadd.s32 %s106, 1
      %s108 = scalar_select %p105, %s106, %s107
      %p111 = pneg %p105
      %p112 = scmp.eq.s32.totalorder %s24, 1
      %p113 = por %p111, %p112
      %p114 = scmp.ne.s32.totalorder %s106, %s109
      %p115 = scmp.eq.s32.totalorder %s24, 0
      %p116 = por %p114, %p115
      %p117 = scmp.ne.s32.totalorder %s106, %s109
      %p118 = scmp.eq.s32.totalorder %s29, 1
      %p119 = por %p117, %p118
      %p120 = scmp.ne.s32.totalorder %s109, %s110
      %p121 = scmp.eq.s32.totalorder %s29, 0
      %p122 = por %p120, %p121
      %p123 = scmp.ne.s32.totalorder %s109, %s110
      %p124 = scmp.eq.s32.totalorder %s30, 1
      %p125 = por %p123, %p124
      %p127 = scmp.ne.s32.totalorder %s110, %s126
      %p128 = scmp.eq.s32.totalorder %s30, 0
      %p129 = por %p127, %p128
      %s130 = ssub.s32 %s31, %s43
      %p131 = scmp.eq.s32.totalorder %s130, 0
      %s133 = sadd.s32 %s132, 1
      %s134 = scalar_select %p131, %s132, %s133
      %p137 = pneg %p131
      %p138 = scmp.eq.s32.totalorder %s24, 1
      %p139 = por %p137, %p138
      %p140 = scmp.ne.s32.totalorder %s132, %s135
      %p141 = scmp.eq.s32.totalorder %s24, 0
      %p142 = por %p140, %p141
      %p143 = scmp.ne.s32.totalorder %s132, %s135
      %p144 = scmp.eq.s32.totalorder %s29, 1
      %p145 = por %p143, %p144
      %p146 = scmp.ne.s32.totalorder %s135, %s136
      %p147 = scmp.eq.s32.totalorder %s29, 0
      %p148 = por %p146, %p147
      %p149 = scmp.ne.s32.totalorder %s135, %s136
      %p150 = scmp.eq.s32.totalorder %s30, 1
      %p151 = por %p149, %p150
      %p153 = scmp.ne.s32.totalorder %s136, %s152
      %p154 = scmp.eq.s32.totalorder %s30, 0
      %p155 = por %p153, %p154
      %s156 = smul.u32 %s31, 2
      %s157 = ssub.s32 1, %s156
      %s158 = smul.u32 %s157, %s32
      %s159 = smul.u32 %s43, 2
      %s160 = ssub.s32 1, %s159
      %s161 = smul.u32 %s160, %s39
      %s162 = ssub.s32 %s31, %s43
      %s163 = ssub.s32 %s158, %s161
      %s164 = sor.u32 %s162, %s163
      %p165 = scmp.eq.s32.totalorder %s164, 0
      %s167 = sadd.s32 %s166, 1
      %s168 = scalar_select %p165, %s166, %s167
      %p171 = pneg %p165
      %p172 = scmp.eq.s32.totalorder %s24, 1
      %p173 = por %p171, %p172
      %p174 = scmp.ne.s32.totalorder %s166, %s169
      %p175 = scmp.eq.s32.totalorder %s24, 0
      %p176 = por %p174, %p175
      %p177 = scmp.ne.s32.totalorder %s166, %s169
      %p178 = scmp.eq.s32.totalorder %s29, 1
      %p179 = por %p177, %p178
      %p180 = scmp.ne.s32.totalorder %s169, %s170
      %p181 = scmp.eq.s32.totalorder %s29, 0
      %p182 = por %p180, %p181
      %p183 = scmp.ne.s32.totalorder %s169, %s170
      %p184 = scmp.eq.s32.totalorder %s30, 1
      %p185 = por %p183, %p184
      %p187 = scmp.ne.s32.totalorder %s170, %s186
      %p188 = scmp.eq.s32.totalorder %s30, 0
      %p189 = por %p187, %p188
      %s190 = ssub.s32 %s31, %s43
      %p191 = scmp.eq.s32.totalorder %s190, 0
      %s193 = sadd.s32 %s192, 1
      %s194 = scalar_select %p191, %s192, %s193
      %p197 = pneg %p191
      %p198 = scmp.eq.s32.totalorder %s24, 1
      %p199 = por %p197, %p198
      %p200 = scmp.ne.s32.totalorder %s192, %s195
      %p201 = scmp.eq.s32.totalorder %s24, 0
      %p202 = por %p200, %p201
      %p203 = scmp.ne.s32.totalorder %s192, %s195
      %p204 = scmp.eq.s32.totalorder %s29, 1
      %p205 = por %p203, %p204
      %p206 = scmp.ne.s32.totalorder %s195, %s196
      %p207 = scmp.eq.s32.totalorder %s29, 0
      %p208 = por %p206, %p207
      %p209 = scmp.ne.s32.totalorder %s195, %s196
      %p210 = scmp.eq.s32.totalorder %s30, 1
      %p211 = por %p209, %p210
      %p213 = scmp.ne.s32.totalorder %s196, %s212
      %p214 = scmp.eq.s32.totalorder %s30, 0
      %p215 = por %p213, %p214
      %p216 = scmp.le.s32.totalorder 1, %s24
      %p217 = scmp.lt.s32.totalorder %s24, 3
      %p218 = pnand %p216, %p217
      %p219 = pneg %p218
      // Predicated region
      $region9: #{tpu_custom_call.1} parent=5 // pred_check
        _
      $region10: #{tpu_custom_call.1} parent=5 // pred_check_branch
        %221 = sbr.rel (%p218) target = $region12
      $region11: #{tpu_custom_call.1} parent=5 // pred_region
        %s222 = ssub.s32 %s24, 1
      $region12: #{tpu_custom_call.1} parent=5 // pred_fallthru
        _
      %p223 = scmp.lt.s32.totalorder %s24, 2
      // Predicated region
      $region13: #{tpu_custom_call.1} parent=5 // pred_check
        %p224 = pneg %p223
      $region14: #{tpu_custom_call.1} parent=5 // pred_check_branch
        %226 = sbr.rel (%p224) target = $region16
      $region15: #{tpu_custom_call.1} parent=5 // pred_region
        // Predicated region
        $region17: #{tpu_custom_call.1} parent=15 // pred_check
          %p227 = pneg %p64
        $region18: #{tpu_custom_call.1} parent=15 // pred_check_branch
          %229 = sbr.rel (%p227) target = $region20
        $region19: #{tpu_custom_call.1} parent=15 // pred_region
          %s230 = sand.u32 %s54, 1
          %s231 = scalar_lea.sflag [#allocation3], %s230
          %s232 = sand.u32 %s54, 1
          %s233 = smul.addr %s232, 192
          %s234 = scalar_lea.vmem [#allocation2], %s233
          %s235 = smul.u32 %s31, 2
          %s236 = ssub.s32 1, %s235
          %s237 = smul.u32 %s236, %s32
          %s238 = smul.u32 8, %s237
          %s240 = ssub.s32 3072, 3072
          %241 = vsyncadd %s231, %s240
          %s242 = smul.addr %s238, 3
          %s243 = smul.addr %s31, 24
          %s244 = sadd.s32 %s242, %s243
          %s245 = smul.addr %s244, 128
          %s246 = scalar_lea.hbm %s0, %s245
          %s247 = sshll.u32 %s234, 4
          %s248 = int_to_ptr.vmem [resolvable:$true] %s247
          %253 = dma.hbm_to_vmem [thread:$0]  %s246, 3072, %s248, %s231, 384, 384, 24
        $region20: #{tpu_custom_call.1} parent=15 // pred_fallthru
          _
        // Predicated region
        $region21: #{tpu_custom_call.1} parent=15 // pred_check
          %p254 = pneg %p90
        $region22: #{tpu_custom_call.1} parent=15 // pred_check_branch
          %256 = sbr.rel (%p254) target = $region24
        $region23: #{tpu_custom_call.1} parent=15 // pred_region
          %s257 = sand.u32 %s24, 1
          %s258 = scalar_lea.sflag [#allocation6], %s257
          %s259 = sand.u32 %s80, 1
          %s260 = smul.addr %s259, 192
          %s261 = scalar_lea.vmem [#allocation5], %s260
          %s263 = ssub.s32 3072, 3072
          %264 = vsyncadd %s258, %s263
          %s265 = smul.addr %s31, 48
          %s266 = smul.addr %s265, 64
          %s267 = scalar_lea.hbm %s1, %s266
          %s268 = sshll.u32 %s261, 4
          %s269 = int_to_ptr.vmem [resolvable:$true] %s268
          %274 = dma.hbm_to_vmem [thread:$0]  %s267, 3072, %s269, %s258, 192, 192, 12
        $region24: #{tpu_custom_call.1} parent=15 // pred_fallthru
          _
        // Predicated region
        $region25: #{tpu_custom_call.1} parent=15 // pred_check
          %p275 = pneg %p116
        $region26: #{tpu_custom_call.1} parent=15 // pred_check_branch
          %277 = sbr.rel (%p275) target = $region28
        $region27: #{tpu_custom_call.1} parent=15 // pred_region
          %p278 = scmp.lt.s32.totalorder %s31, 1
          %s279 = scalar_select %p278, %s31, 1
          %s280 = scalar_lea.vmem %s2, %s279
        $region28: #{tpu_custom_call.1} parent=15 // pred_fallthru
          _
        // Predicated region
        $region29: #{tpu_custom_call.1} parent=15 // pred_check
          %p281 = pneg %p142
        $region30: #{tpu_custom_call.1} parent=15 // pred_check_branch
          %283 = sbr.rel (%p281) target = $region32
        $region31: #{tpu_custom_call.1} parent=15 // pred_region
          %s284 = sand.u32 %s24, 1
          %s285 = scalar_lea.sflag [#allocation6], %s284
          %s286 = sand.u32 %s132, 1
          %s287 = smul.addr %s286, 8
          %s288 = scalar_lea.vmem [#allocation7], %s287
          %s290 = ssub.s32 128, 128
          %291 = vsyncadd %s285, %s290
          %s292 = smul.addr %s31, 128
          %s293 = scalar_lea.hbm %s3, %s292
          %s295 = sshll.u32 %s288, 4
          %s296 = int_to_ptr.vmem [resolvable:$true] %s295
          %298 = dma.hbm_to_vmem [thread:$0]  %s293, 128, %s296, %s285
        $region32: #{tpu_custom_call.1} parent=15 // pred_fallthru
          _
      $region16: #{tpu_custom_call.1} parent=5 // pred_fallthru
        _
      %p299 = scmp.le.s32.totalorder 1, %s24
      %p300 = scmp.lt.s32.totalorder %s24, 3
      %p301 = pnand %p299, %p300
      %p302 = pneg %p301
      // Predicated region
      $region33: #{tpu_custom_call.1} parent=5 // pred_check
        _
      $region34: #{tpu_custom_call.1} parent=5 // pred_check_branch
        %304 = sbr.rel (%p301) target = $region36
      $region35: #{tpu_custom_call.1} parent=5 // pred_region
        %s305 = ssub.s32 %s24, 1
        %s306 = sand.u32 %s57, 1
        %s307 = scalar_lea.sflag [#allocation3], %s306
        %s308 = sand.u32 %s57, 1
        %s309 = smul.addr %s308, 192
        %s310 = scalar_lea.vmem [#allocation2], %s309
        // Predicated region
        $region37: #{tpu_custom_call.1} parent=35 // pred_check
          %p311 = pneg %p70
        $region38: #{tpu_custom_call.1} parent=35 // pred_check_branch
          %313 = sbr.rel (%p311) target = $region40
        $region39: #{tpu_custom_call.1} parent=35 // pred_region
          %314 = dma.done %s307, 3072
        $region40: #{tpu_custom_call.1} parent=35 // pred_fallthru
          _
        %s315 = sand.u32 %s29, 1
        %s316 = scalar_lea.sflag [#allocation6], %s315
        %s317 = sand.u32 %s83, 1
        %s318 = smul.addr %s317, 192
        %s319 = scalar_lea.vmem [#allocation5], %s318
        // Predicated region
        $region41: #{tpu_custom_call.1} parent=35 // pred_check
          %p320 = pneg %p96
        $region42: #{tpu_custom_call.1} parent=35 // pred_check_branch
          %322 = sbr.rel (%p320) target = $region44
        $region43: #{tpu_custom_call.1} parent=35 // pred_region
          %323 = dma.done %s316, 3072
        $region44: #{tpu_custom_call.1} parent=35 // pred_fallthru
          _
        %s324 = sand.u32 %s29, 1
        %s325 = scalar_lea.sflag [#allocation6], %s324
        %s326 = sand.u32 %s135, 1
        %s327 = smul.addr %s326, 8
        %s328 = scalar_lea.vmem [#allocation7], %s327
        // Predicated region
        $region45: #{tpu_custom_call.1} parent=35 // pred_check
          %p329 = pneg %p148
        $region46: #{tpu_custom_call.1} parent=35 // pred_check_branch
          %331 = sbr.rel (%p329) target = $region48
        $region47: #{tpu_custom_call.1} parent=35 // pred_region
          %332 = dma.done %s325, 128
        $region48: #{tpu_custom_call.1} parent=35 // pred_fallthru
          _
        %s333 = sand.u32 %s57, 1
        %s334 = scalar_lea.sflag [#allocation3], %s333
        %s335 = sand.u32 %s57, 1
        %s336 = smul.addr %s335, 192
        %s337 = scalar_lea.vmem [#allocation2], %s336
        %p338 = pneg %p70
        %p339 = pneg %p67
        %s340 = sand.u32 %s29, 1
        %s341 = scalar_lea.sflag [#allocation6], %s340
        %s342 = sand.u32 %s83, 1
        %s343 = smul.addr %s342, 192
        %s344 = scalar_lea.vmem [#allocation5], %s343
        %p345 = pneg %p96
        %p346 = pneg %p93
        %p347 = scmp.lt.s32.totalorder %s33, 1
        %s348 = scalar_select %p347, %s33, 1
        %s349 = scalar_lea.vmem %s2, %s348
        %p350 = pneg %p122
        %p351 = pneg %p119
        %s352 = sand.u32 %s29, 1
        %s353 = scalar_lea.sflag [#allocation6], %s352
        %s354 = sand.u32 %s135, 1
        %s355 = smul.addr %s354, 8
        %s356 = scalar_lea.vmem [#allocation7], %s355
        %p357 = pneg %p148
        %p358 = pneg %p145
        %p359 = pneg %p182
        %p360 = pneg %p179
        %s361 = sand.u32 %s169, 1
        %s362 = scalar_lea.sflag [#allocation4], %s361
        %s363 = sand.u32 %s169, 1
        %s364 = smul.addr %s363, 64
        %s365 = scalar_lea.vmem [#allocation8], %s364
        %p366 = pneg %p208
        %p367 = pneg %p205
        %s368 = sand.u32 %s195, 1
        %s369 = scalar_lea.sflag [#allocation10], %s368
        %s370 = sand.u32 %s195, 1
        %s371 = smul.addr %s370, 8
        %s372 = scalar_lea.vmem [#allocation9], %s371
        %s373 = smul.u32 %s33, 2
        %s374 = ssub.s32 1, %s373
        %s375 = smul.u32 %s374, %s34
        %s376 = smul.u32 8, %s375
        %p377 = scmp.lt.s32.totalorder %s33, 1
        %s378 = scalar_select %p377, %s33, 1
        %s379 = scalar_lea.vmem %s2, %s378
        %s380 = smul.u32 %s33, 2
        %s381 = ssub.s32 1, %s380
        %s382 = smul.u32 %s381, %s34
        %s383 = smul.u32 8, %s382
        %p385 = scmp.eq.s32.totalorder %s34, 0
        // Predicated region
        $region49: #{tpu_custom_call.1} parent=35 // pred_check
          %p386 = pneg %p385
        $region50: #{tpu_custom_call.1} parent=35 // pred_check_branch
          %388 = sbr.rel (%p386) target = $region52
        $region51: #{tpu_custom_call.1} parent=35 // pred_region
          %v389 = vld [vmem:[%s328] sm:$0xff]
          %390 = vst [vmem:[%s372] sm:$0xff] %v389
        $region52: #{tpu_custom_call.1} parent=35 // pred_fallthru
          _
        %v391 = vld [vmem:[%s319] sm:$0xff]
        %v392 = vld [vmem:[%s319 + $0x8] sm:$0xf]
        %v393 = vld [vmem:[%s319 + $0xc] sm:$0xff]
        %v394 = vld [vmem:[%s319 + $0x14] sm:$0xf]
        %v395 = vld [vmem:[%s319 + $0x18] sm:$0xff]
        %v396 = vld [vmem:[%s319 + $0x20] sm:$0xf]
        %v397 = vld [vmem:[%s319 + $0x24] sm:$0xff]
        %v398 = vld [vmem:[%s319 + $0x2c] sm:$0xf]
        %v399 = vld [vmem:[%s319 + $0x30] sm:$0xff]
        %v400 = vld [vmem:[%s319 + $0x38] sm:$0xf]
        %v401 = vld [vmem:[%s319 + $0x3c] sm:$0xff]
        %v402 = vld [vmem:[%s319 + $0x44] sm:$0xf]
        %v403 = vld [vmem:[%s319 + $0x48] sm:$0xff]
        %v404 = vld [vmem:[%s319 + $0x50] sm:$0xf]
        %v405 = vld [vmem:[%s319 + $0x54] sm:$0xff]
        %v406 = vld [vmem:[%s319 + $0x5c] sm:$0xf]
        %v407 = vld [vmem:[%s319 + $0x60] sm:$0xff]
        %v408 = vld [vmem:[%s319 + $0x68] sm:$0xf]
        %v409 = vld [vmem:[%s319 + $0x6c] sm:$0xff]
        %v410 = vld [vmem:[%s319 + $0x74] sm:$0xf]
        %v411 = vld [vmem:[%s319 + $0x78] sm:$0xff]
        %v412 = vld [vmem:[%s319 + $0x80] sm:$0xf]
        %v413 = vld [vmem:[%s319 + $0x84] sm:$0xff]
        %v414 = vld [vmem:[%s319 + $0x8c] sm:$0xf]
        %v415 = vld [vmem:[%s319 + $0x90] sm:$0xff]
        %v416 = vld [vmem:[%s319 + $0x98] sm:$0xf]
        %v417 = vld [vmem:[%s319 + $0x9c] sm:$0xff]
        %v418 = vld [vmem:[%s319 + $0xa4] sm:$0xf]
        %v419 = vld [vmem:[%s319 + $0xa8] sm:$0xff]
        %v420 = vld [vmem:[%s319 + $0xb0] sm:$0xf]
        %v421 = vld [vmem:[%s319 + $0xb4] sm:$0xff]
        %v422 = vld [vmem:[%s319 + $0xbc] sm:$0xf]
        %v423 = vld [vmem:[%s379] sm:$0x1]
        %s424 = smul.u32 %s33, 2
        %s425 = ssub.s32 1, %s424
        %s426 = smul.u32 %s425, %s34
        %s427 = smul.u32 %s426, 8
        %v428 = vld [vmem:[%s372] sm:$0xff]
        %s429 = smul.u32 %s33, 7
        %s430 = smul.u32 %s429, 3
        %s431 = smul.addr %s430, 8
        %s432 = scalar_lea.vmem %s310, %s431 [#allocation2]
        %v433 = vld [vmem:[%s432] sm:$0xff]
        %v434 = vld [vmem:[%s432 + $0x8] sm:$0xff]
        %v435 = vld [vmem:[%s432 + $0x10] sm:$0xff]
        %v436 = vpack.c.bf16 %v428, %v428
        %v469 = vunpack.c.l.b16 %v391
        %v470 = vunpack.c.h.b16 %v391
        %v471 = vunpack.c.l.b16 %v392
        %v472 = vunpack.c.l.b16 %v393
        %v473 = vunpack.c.h.b16 %v393
        %v474 = vunpack.c.l.b16 %v394
        %v475 = vunpack.c.l.b16 %v395
        %v476 = vunpack.c.h.b16 %v395
        %v477 = vunpack.c.l.b16 %v396
        %v478 = vunpack.c.l.b16 %v397
        %v479 = vunpack.c.h.b16 %v397
        %v480 = vunpack.c.l.b16 %v398
        %v481 = vunpack.c.l.b16 %v399
        %v482 = vunpack.c.h.b16 %v399
        %v483 = vunpack.c.l.b16 %v400
        %v484 = vunpack.c.l.b16 %v401
        %v485 = vunpack.c.h.b16 %v401
        %v486 = vunpack.c.l.b16 %v402
        %v487 = vunpack.c.l.b16 %v403
        %v488 = vunpack.c.h.b16 %v403
        %v489 = vunpack.c.l.b16 %v404
        %v490 = vunpack.c.l.b16 %v405
        %v491 = vunpack.c.h.b16 %v405
        %v492 = vunpack.c.l.b16 %v406
        %v493 = vunpack.c.l.b16 %v407
        %v494 = vunpack.c.h.b16 %v407
        %v495 = vunpack.c.l.b16 %v408
        %v496 = vunpack.c.l.b16 %v409
        %v497 = vunpack.c.h.b16 %v409
        %v498 = vunpack.c.l.b16 %v410
        %v499 = vunpack.c.l.b16 %v411
        %v500 = vunpack.c.h.b16 %v411
        %v501 = vunpack.c.l.b16 %v412
        %v502 = vunpack.c.l.b16 %v413
        %v503 = vunpack.c.h.b16 %v413
        %v504 = vunpack.c.l.b16 %v414
        %v505 = vunpack.c.l.b16 %v415
        %v506 = vunpack.c.h.b16 %v415
        %v507 = vunpack.c.l.b16 %v416
        %v508 = vunpack.c.l.b16 %v417
        %v509 = vunpack.c.h.b16 %v417
        %v510 = vunpack.c.l.b16 %v418
        %v511 = vunpack.c.l.b16 %v419
        %v512 = vunpack.c.h.b16 %v419
        %v513 = vunpack.c.l.b16 %v420
        %v514 = vunpack.c.l.b16 %v421
        %v515 = vunpack.c.h.b16 %v421
        %v516 = vunpack.c.l.b16 %v422
        %v517 = vpack.c.b16 %v472, %v469
        %v518 = vpack.c.b16 %v473, %v470
        %v519 = vpack.c.b16 %v474, %v471
        %v520 = vpack.c.b16 %v478, %v475
        %v521 = vpack.c.b16 %v479, %v476
        %v522 = vpack.c.b16 %v480, %v477
        %v523 = vpack.c.b16 %v484, %v481
        %v524 = vpack.c.b16 %v485, %v482
        %v525 = vpack.c.b16 %v486, %v483
        %v526 = vpack.c.b16 %v490, %v487
        %v527 = vpack.c.b16 %v491, %v488
        %v528 = vpack.c.b16 %v492, %v489
        %v529 = vpack.c.b16 %v496, %v493
        %v530 = vpack.c.b16 %v497, %v494
        %v531 = vpack.c.b16 %v498, %v495
        %v532 = vpack.c.b16 %v502, %v499
        %v533 = vpack.c.b16 %v503, %v500
        %v534 = vpack.c.b16 %v504, %v501
        %v535 = vpack.c.b16 %v508, %v505
        %v536 = vpack.c.b16 %v509, %v506
        %v537 = vpack.c.b16 %v510, %v507
        %v538 = vpack.c.b16 %v514, %v511
        %v539 = vpack.c.b16 %v515, %v512
        %v540 = vpack.c.b16 %v516, %v513
        %565 = vmatprep.subr.bf16.mxu0 %v539
        %566 = vmatpush1.bf16.msra.mxu0 %v538
        %567 = vmatprep.subr.bf16.mxu0 %v536
        %568 = vmatpush1.bf16.msra.mxu0 %v535
        %569 = vmatprep.subr.bf16.mxu0 %v533
        %570 = vmatpush1.bf16.msra.mxu0 %v532
        %571 = vmatprep.subr.bf16.mxu0 %v530
        %572 = vmatpush1.bf16.msra.mxu0 %v529
        %573 = vmatprep.subr.bf16.mxu0 %v527
        %574 = vmatpush1.bf16.msra.mxu0 %v526
        %575 = vmatprep.subr.bf16.mxu0 %v524
        %576 = vmatpush1.bf16.msra.mxu0 %v523
        %577 = vmatprep.subr.bf16.mxu0 %v521
        %578 = vmatpush1.bf16.msra.mxu0 %v520
        %579 = vmatprep.subr.bf16.mxu0 %v518
        %580 = vmatpush1.bf16.msra.mxu0 %v517
        %581 = vmatprep.subr.bf16.mxu0 0
        %582 = vmatpush2.bf16.msra.mxu0 0
        %583 = vmatprep.subr.bf16.mxu0 0
        %584 = vmatpush2.bf16.msra.mxu0 0
        %585 = vmatprep.subr.bf16.mxu0 0
        %586 = vmatpush2.bf16.msra.mxu0 0
        %587 = vmatprep.subr.bf16.mxu0 0
        %588 = vmatpush2.bf16.msra.mxu0 0
        %589 = vmatprep.subr.bf16.mxu0 0
        %590 = vmatpush2.bf16.msra.mxu0 0
        %591 = vmatprep.subr.bf16.mxu0 0
        %592 = vmatpush2.bf16.msra.mxu0 0
        %593 = vmatprep.subr.bf16.mxu0 0
        %594 = vmatpush2.bf16.msra.mxu0 0
        %595 = vmatprep.subr.bf16.mxu0 0
        %596 = vmatpush2.bf16.msra.mxu0 0
        %597 = vmatprep.mubr.bf16.mxu0 0
        %598 = vmatmul.mubr.bf16.gmra.mxu0 %v436
        %v599 = vpop.f32.mrf.mxu0
        %v600 = vadd.f32 0.0, %v599
        %v601 = vpop.f32.mrf.mxu0
        %v602 = vadd.f32 0.0, %v601
        %v603 = vpop.f32.mrf.mxu0
        %v604 = vpop.f32.mrf.mxu0
        %605 = vdwg.mxu0
        %606 = vmatprep.subr.bf16.mxu0 0
        %607 = vmatpush1.bf16.msra.mxu0 %v540
        %608 = vmatprep.subr.bf16.mxu0 0
        %609 = vmatpush1.bf16.msra.mxu0 %v537
        %610 = vmatprep.subr.bf16.mxu0 0
        %611 = vmatpush1.bf16.msra.mxu0 %v534
        %612 = vmatprep.subr.bf16.mxu0 0
        %613 = vmatpush1.bf16.msra.mxu0 %v531
        %614 = vmatprep.subr.bf16.mxu0 0
        %615 = vmatpush1.bf16.msra.mxu0 %v528
        %616 = vmatprep.subr.bf16.mxu0 0
        %617 = vmatpush1.bf16.msra.mxu0 %v525
        %618 = vmatprep.subr.bf16.mxu0 0
        %619 = vmatpush1.bf16.msra.mxu0 %v522
        %620 = vmatprep.subr.bf16.mxu0 0
        %621 = vmatpush1.bf16.msra.mxu0 %v519
        %622 = vmatprep.subr.bf16.mxu0 0
        %623 = vmatpush2.bf16.msra.mxu0 0
        %624 = vmatprep.subr.bf16.mxu0 0
        %625 = vmatpush2.bf16.msra.mxu0 0
        %626 = vmatprep.subr.bf16.mxu0 0
        %627 = vmatpush2.bf16.msra.mxu0 0
        %628 = vmatprep.subr.bf16.mxu0 0
        %629 = vmatpush2.bf16.msra.mxu0 0
        %630 = vmatprep.subr.bf16.mxu0 0
        %631 = vmatpush2.bf16.msra.mxu0 0
        %632 = vmatprep.subr.bf16.mxu0 0
        %633 = vmatpush2.bf16.msra.mxu0 0
        %634 = vmatprep.subr.bf16.mxu0 0
        %635 = vmatpush2.bf16.msra.mxu0 0
        %636 = vmatprep.subr.bf16.mxu0 0
        %637 = vmatpush2.bf16.msra.mxu0 0
        %638 = vmatprep.mubr.bf16.mxu0 0
        %639 = vmatmul.mubr.bf16.gmra.mxu0 %v436
        %v640 = vpop.f32.mrf.mxu0
        %v641 = vadd.f32 0.0, %v640
        %v642 = vpop.f32.mrf.mxu0
        %v643 = vpop.f32.mrf.mxu0
        %v644 = vpop.f32.mrf.mxu0
        %645 = vdwg.mxu0
        %v646 = vadd.f32 %v433, %v600
        %v647 = vxor.u32 %v646, 2147483648
        %v648 = vmul.f32 %v647, 1.442695
        %v649 = vpow.pop %v648
        %v650 = vadd.f32 %v649, 1.0
        %v651 = vrcp.pop %v650
        %v652 = vmul.f32 1.0, %v651
        %v653 = vadd.f32 %v434, %v602
        %v654 = vxor.u32 %v653, 2147483648
        %v655 = vmul.f32 %v654, 1.442695
        %v656 = vpow.pop %v655
        %v657 = vadd.f32 %v656, 1.0
        %v658 = vrcp.pop %v657
        %v659 = vmul.f32 1.0, %v658
        %v661 = vlaneseq
        %v662 = vshrl.u32 %v661, 7
        %v663 = vsub.s32 0, %v662
        %v664 = vrot.slane %v423, %v663
        %v666 = vadd.f32 %v641, %v664
        %v667 = vmul.f32 %v652, %v666
        %v668 = vadd.f32 %v435, %v667
        %v669 = vtanh.pop %v668
        %v670 = vsub.f32 1.0, %v659
        %v671 = vmul.f32 %v670, %v669
        %v672 = vmul.f32 %v659, %v428
        %v673 = vadd.f32 %v671, %v672
        %s674 = sadd.s32 %s427, %s429
        %p675 = scmp.lt.s32.totalorder %s674, 8
        %s676 = scalar_select %p675, 1, 0
        %v677 = vstv %s676
        %vm678 = vcmp.eq.s32.totalorder %v677, 1
        %v679 = vsel %vm678, %v673, %v428
        %s680 = smul.u32 %s429, 8
        %s681 = scalar_lea.vmem %s365, %s680 [#allocation8]
        %682 = vst [vmem:[%s681] sm:$0xff] %v679
        %s683 = sadd.s32 %s429, %s425
        %s684 = smul.u32 %s683, 3
        %s685 = smul.addr %s684, 8
        %s686 = scalar_lea.vmem %s310, %s685 [#allocation2]
        %v687 = vld [vmem:[%s686] sm:$0xff]
        %v688 = vld [vmem:[%s686 + $0x8] sm:$0xff]
        %v689 = vld [vmem:[%s686 + $0x10] sm:$0xff]
        %v690 = vpack.c.bf16 %v679, %v679
        %691 = vmatprep.subr.bf16.mxu0 %v539
        %692 = vmatpush1.bf16.msra.mxu0 %v538
        %693 = vmatprep.subr.bf16.mxu0 %v536
        %694 = vmatpush1.bf16.msra.mxu0 %v535
        %695 = vmatprep.subr.bf16.mxu0 %v533
        %696 = vmatpush1.bf16.msra.mxu0 %v532
        %697 = vmatprep.subr.bf16.mxu0 %v530
        %698 = vmatpush1.bf16.msra.mxu0 %v529
        %699 = vmatprep.subr.bf16.mxu0 %v527
        %700 = vmatpush1.bf16.msra.mxu0 %v526
        %701 = vmatprep.subr.bf16.mxu0 %v524
        %702 = vmatpush1.bf16.msra.mxu0 %v523
        %703 = vmatprep.subr.bf16.mxu0 %v521
        %704 = vmatpush1.bf16.msra.mxu0 %v520
        %705 = vmatprep.subr.bf16.mxu0 %v518
        %706 = vmatpush1.bf16.msra.mxu0 %v517
        %707 = vmatprep.subr.bf16.mxu0 0
        %708 = vmatpush2.bf16.msra.mxu0 0
        %709 = vmatprep.subr.bf16.mxu0 0
        %710 = vmatpush2.bf16.msra.mxu0 0
        %711 = vmatprep.subr.bf16.mxu0 0
        %712 = vmatpush2.bf16.msra.mxu0 0
        %713 = vmatprep.subr.bf16.mxu0 0
        %714 = vmatpush2.bf16.msra.mxu0 0
        %715 = vmatprep.subr.bf16.mxu0 0
        %716 = vmatpush2.bf16.msra.mxu0 0
        %717 = vmatprep.subr.bf16.mxu0 0
        %718 = vmatpush2.bf16.msra.mxu0 0
        %719 = vmatprep.subr.bf16.mxu0 0
        %720 = vmatpush2.bf16.msra.mxu0 0
        %721 = vmatprep.subr.bf16.mxu0 0
        %722 = vmatpush2.bf16.msra.mxu0 0
        %723 = vmatprep.mubr.bf16.mxu0 0
        %724 = vmatmul.mubr.bf16.gmra.mxu0 %v690
        %v725 = vpop.f32.mrf.mxu0
        %v726 = vadd.f32 0.0, %v725
        %v727 = vpop.f32.mrf.mxu0
        %v728 = vadd.f32 0.0, %v727
        %v729 = vpop.f32.mrf.mxu0
        %v730 = vpop.f32.mrf.mxu0
        %731 = vdwg.mxu0
        %732 = vmatprep.subr.bf16.mxu0 0
        %733 = vmatpush1.bf16.msra.mxu0 %v540
        %734 = vmatprep.subr.bf16.mxu0 0
        %735 = vmatpush1.bf16.msra.mxu0 %v537
        %736 = vmatprep.subr.bf16.mxu0 0
        %737 = vmatpush1.bf16.msra.mxu0 %v534
        %738 = vmatprep.subr.bf16.mxu0 0
        %739 = vmatpush1.bf16.msra.mxu0 %v531
        %740 = vmatprep.subr.bf16.mxu0 0
        %741 = vmatpush1.bf16.msra.mxu0 %v528
        %742 = vmatprep.subr.bf16.mxu0 0
        %743 = vmatpush1.bf16.msra.mxu0 %v525
        %744 = vmatprep.subr.bf16.mxu0 0
        %745 = vmatpush1.bf16.msra.mxu0 %v522
        %746 = vmatprep.subr.bf16.mxu0 0
        %747 = vmatpush1.bf16.msra.mxu0 %v519
        %748 = vmatprep.subr.bf16.mxu0 0
        %749 = vmatpush2.bf16.msra.mxu0 0
        %750 = vmatprep.subr.bf16.mxu0 0
        %751 = vmatpush2.bf16.msra.mxu0 0
        %752 = vmatprep.subr.bf16.mxu0 0
        %753 = vmatpush2.bf16.msra.mxu0 0
        %754 = vmatprep.subr.bf16.mxu0 0
        %755 = vmatpush2.bf16.msra.mxu0 0
        %756 = vmatprep.subr.bf16.mxu0 0
        %757 = vmatpush2.bf16.msra.mxu0 0
        %758 = vmatprep.subr.bf16.mxu0 0
        %759 = vmatpush2.bf16.msra.mxu0 0
        %760 = vmatprep.subr.bf16.mxu0 0
        %761 = vmatpush2.bf16.msra.mxu0 0
        %762 = vmatprep.subr.bf16.mxu0 0
        %763 = vmatpush2.bf16.msra.mxu0 0
        %764 = vmatprep.mubr.bf16.mxu0 0
        %765 = vmatmul.mubr.bf16.gmra.mxu0 %v690
        %v766 = vpop.f32.mrf.mxu0
        %v767 = vadd.f32 0.0, %v766
        %v768 = vpop.f32.mrf.mxu0
        %v769 = vpop.f32.mrf.mxu0
        %v770 = vpop.f32.mrf.mxu0
        %771 = vdwg.mxu0
        %v772 = vadd.f32 %v687, %v726
        %v773 = vxor.u32 %v772, 2147483648
        %v774 = vmul.f32 %v773, 1.442695
        %v775 = vpow.pop %v774
        %v776 = vadd.f32 %v775, 1.0
        %v777 = vrcp.pop %v776
        %v778 = vmul.f32 1.0, %v777
        %v779 = vadd.f32 %v688, %v728
        %v780 = vxor.u32 %v779, 2147483648
        %v781 = vmul.f32 %v780, 1.442695
        %v782 = vpow.pop %v781
        %v783 = vadd.f32 %v782, 1.0
        %v784 = vrcp.pop %v783
        %v785 = vmul.f32 1.0, %v784
        %v786 = vadd.f32 %v767, %v664
        %v787 = vmul.f32 %v778, %v786
        %v788 = vadd.f32 %v689, %v787
        %v789 = vtanh.pop %v788
        %v790 = vsub.f32 1.0, %v785
        %v791 = vmul.f32 %v790, %v789
        %v792 = vmul.f32 %v785, %v679
        %v793 = vadd.f32 %v791, %v792
        %s794 = sadd.s32 %s427, %s683
        %p795 = scmp.lt.s32.totalorder %s794, 8
        %s796 = scalar_select %p795, 1, 0
        %v797 = vstv %s796
        %vm798 = vcmp.eq.s32.totalorder %v797, 1
        %v799 = vsel %vm798, %v793, %v679
        %s800 = smul.u32 %s683, 8
        %s801 = scalar_lea.vmem %s365, %s800 [#allocation8]
        %802 = vst [vmem:[%s801] sm:$0xff] %v799
        %s803 = smul.u32 %s425, 2
        %s804 = sadd.s32 %s429, %s803
        %s805 = smul.u32 %s804, 3
        %s806 = smul.addr %s805, 8
        %s807 = scalar_lea.vmem %s310, %s806 [#allocation2]
        %v808 = vld [vmem:[%s807] sm:$0xff]
        %v809 = vld [vmem:[%s807 + $0x8] sm:$0xff]
        %v810 = vld [vmem:[%s807 + $0x10] sm:$0xff]
        %v811 = vpack.c.bf16 %v799, %v799
        %812 = vmatprep.subr.bf16.mxu0 %v539
        %813 = vmatpush1.bf16.msra.mxu0 %v538
        %814 = vmatprep.subr.bf16.mxu0 %v536
        %815 = vmatpush1.bf16.msra.mxu0 %v535
        %816 = vmatprep.subr.bf16.mxu0 %v533
        %817 = vmatpush1.bf16.msra.mxu0 %v532
        %818 = vmatprep.subr.bf16.mxu0 %v530
        %819 = vmatpush1.bf16.msra.mxu0 %v529
        %820 = vmatprep.subr.bf16.mxu0 %v527
        %821 = vmatpush1.bf16.msra.mxu0 %v526
        %822 = vmatprep.subr.bf16.mxu0 %v524
        %823 = vmatpush1.bf16.msra.mxu0 %v523
        %824 = vmatprep.subr.bf16.mxu0 %v521
        %825 = vmatpush1.bf16.msra.mxu0 %v520
        %826 = vmatprep.subr.bf16.mxu0 %v518
        %827 = vmatpush1.bf16.msra.mxu0 %v517
        %828 = vmatprep.subr.bf16.mxu0 0
        %829 = vmatpush2.bf16.msra.mxu0 0
        %830 = vmatprep.subr.bf16.mxu0 0
        %831 = vmatpush2.bf16.msra.mxu0 0
        %832 = vmatprep.subr.bf16.mxu0 0
        %833 = vmatpush2.bf16.msra.mxu0 0
        %834 = vmatprep.subr.bf16.mxu0 0
        %835 = vmatpush2.bf16.msra.mxu0 0
        %836 = vmatprep.subr.bf16.mxu0 0
        %837 = vmatpush2.bf16.msra.mxu0 0
        %838 = vmatprep.subr.bf16.mxu0 0
        %839 = vmatpush2.bf16.msra.mxu0 0
        %840 = vmatprep.subr.bf16.mxu0 0
        %841 = vmatpush2.bf16.msra.mxu0 0
        %842 = vmatprep.subr.bf16.mxu0 0
        %843 = vmatpush2.bf16.msra.mxu0 0
        %844 = vmatprep.mubr.bf16.mxu0 0
        %845 = vmatmul.mubr.bf16.gmra.mxu0 %v811
        %v846 = vpop.f32.mrf.mxu0
        %v847 = vadd.f32 0.0, %v846
        %v848 = vpop.f32.mrf.mxu0
        %v849 = vadd.f32 0.0, %v848
        %v850 = vpop.f32.mrf.mxu0
        %v851 = vpop.f32.mrf.mxu0
        %852 = vdwg.mxu0
        %853 = vmatprep.subr.bf16.mxu0 0
        %854 = vmatpush1.bf16.msra.mxu0 %v540
        %855 = vmatprep.subr.bf16.mxu0 0
        %856 = vmatpush1.bf16.msra.mxu0 %v537
        %857 = vmatprep.subr.bf16.mxu0 0
        %858 = vmatpush1.bf16.msra.mxu0 %v534
        %859 = vmatprep.subr.bf16.mxu0 0
        %860 = vmatpush1.bf16.msra.mxu0 %v531
        %861 = vmatprep.subr.bf16.mxu0 0
        %862 = vmatpush1.bf16.msra.mxu0 %v528
        %863 = vmatprep.subr.bf16.mxu0 0
        %864 = vmatpush1.bf16.msra.mxu0 %v525
        %865 = vmatprep.subr.bf16.mxu0 0
        %866 = vmatpush1.bf16.msra.mxu0 %v522
        %867 = vmatprep.subr.bf16.mxu0 0
        %868 = vmatpush1.bf16.msra.mxu0 %v519
        %869 = vmatprep.subr.bf16.mxu0 0
        %870 = vmatpush2.bf16.msra.mxu0 0
        %871 = vmatprep.subr.bf16.mxu0 0
        %872 = vmatpush2.bf16.msra.mxu0 0
        %873 = vmatprep.subr.bf16.mxu0 0
        %874 = vmatpush2.bf16.msra.mxu0 0
        %875 = vmatprep.subr.bf16.mxu0 0
        %876 = vmatpush2.bf16.msra.mxu0 0
        %877 = vmatprep.subr.bf16.mxu0 0
        %878 = vmatpush2.bf16.msra.mxu0 0
        %879 = vmatprep.subr.bf16.mxu0 0
        %880 = vmatpush2.bf16.msra.mxu0 0
        %881 = vmatprep.subr.bf16.mxu0 0
        %882 = vmatpush2.bf16.msra.mxu0 0
        %883 = vmatprep.subr.bf16.mxu0 0
        %884 = vmatpush2.bf16.msra.mxu0 0
        %885 = vmatprep.mubr.bf16.mxu0 0
        %886 = vmatmul.mubr.bf16.gmra.mxu0 %v811
        %v887 = vpop.f32.mrf.mxu0
        %v888 = vadd.f32 0.0, %v887
        %v889 = vpop.f32.mrf.mxu0
        %v890 = vpop.f32.mrf.mxu0
        %v891 = vpop.f32.mrf.mxu0
        %892 = vdwg.mxu0
        %v893 = vadd.f32 %v808, %v847
        %v894 = vxor.u32 %v893, 2147483648
        %v895 = vmul.f32 %v894, 1.442695
        %v896 = vpow.pop %v895
        %v897 = vadd.f32 %v896, 1.0
        %v898 = vrcp.pop %v897
        %v899 = vmul.f32 1.0, %v898
        %v900 = vadd.f32 %v809, %v849
        %v901 = vxor.u32 %v900, 2147483648
        %v902 = vmul.f32 %v901, 1.442695
        %v903 = vpow.pop %v902
        %v904 = vadd.f32 %v903, 1.0
        %v905 = vrcp.pop %v904
        %v906 = vmul.f32 1.0, %v905
        %v907 = vadd.f32 %v888, %v664
        %v908 = vmul.f32 %v899, %v907
        %v909 = vadd.f32 %v810, %v908
        %v910 = vtanh.pop %v909
        %v911 = vsub.f32 1.0, %v906
        %v912 = vmul.f32 %v911, %v910
        %v913 = vmul.f32 %v906, %v799
        %v914 = vadd.f32 %v912, %v913
        %s915 = sadd.s32 %s427, %s804
        %p916 = scmp.lt.s32.totalorder %s915, 8
        %s917 = scalar_select %p916, 1, 0
        %v918 = vstv %s917
        %vm919 = vcmp.eq.s32.totalorder %v918, 1
        %v920 = vsel %vm919, %v914, %v799
        %s921 = smul.u32 %s804, 8
        %s922 = scalar_lea.vmem %s365, %s921 [#allocation8]
        %923 = vst [vmem:[%s922] sm:$0xff] %v920
        %s924 = smul.u32 %s425, 3
        %s925 = sadd.s32 %s429, %s924
        %s926 = smul.u32 %s925, 3
        %s927 = smul.addr %s926, 8
        %s928 = scalar_lea.vmem %s310, %s927 [#allocation2]
        %v929 = vld [vmem:[%s928] sm:$0xff]
        %v930 = vld [vmem:[%s928 + $0x8] sm:$0xff]
        %v931 = vld [vmem:[%s928 + $0x10] sm:$0xff]
        %v932 = vpack.c.bf16 %v920, %v920
        %933 = vmatprep.subr.bf16.mxu0 %v539
        %934 = vmatpush1.bf16.msra.mxu0 %v538
        %935 = vmatprep.subr.bf16.mxu0 %v536
        %936 = vmatpush1.bf16.msra.mxu0 %v535
        %937 = vmatprep.subr.bf16.mxu0 %v533
        %938 = vmatpush1.bf16.msra.mxu0 %v532
        %939 = vmatprep.subr.bf16.mxu0 %v530
        %940 = vmatpush1.bf16.msra.mxu0 %v529
        %941 = vmatprep.subr.bf16.mxu0 %v527
        %942 = vmatpush1.bf16.msra.mxu0 %v526
        %943 = vmatprep.subr.bf16.mxu0 %v524
        %944 = vmatpush1.bf16.msra.mxu0 %v523
        %945 = vmatprep.subr.bf16.mxu0 %v521
        %946 = vmatpush1.bf16.msra.mxu0 %v520
        %947 = vmatprep.subr.bf16.mxu0 %v518
        %948 = vmatpush1.bf16.msra.mxu0 %v517
        %949 = vmatprep.subr.bf16.mxu0 0
        %950 = vmatpush2.bf16.msra.mxu0 0
        %951 = vmatprep.subr.bf16.mxu0 0
        %952 = vmatpush2.bf16.msra.mxu0 0
        %953 = vmatprep.subr.bf16.mxu0 0
        %954 = vmatpush2.bf16.msra.mxu0 0
        %955 = vmatprep.subr.bf16.mxu0 0
        %956 = vmatpush2.bf16.msra.mxu0 0
        %957 = vmatprep.subr.bf16.mxu0 0
        %958 = vmatpush2.bf16.msra.mxu0 0
        %959 = vmatprep.subr.bf16.mxu0 0
        %960 = vmatpush2.bf16.msra.mxu0 0
        %961 = vmatprep.subr.bf16.mxu0 0
        %962 = vmatpush2.bf16.msra.mxu0 0
        %963 = vmatprep.subr.bf16.mxu0 0
        %964 = vmatpush2.bf16.msra.mxu0 0
        %965 = vmatprep.mubr.bf16.mxu0 0
        %966 = vmatmul.mubr.bf16.gmra.mxu0 %v932
        %v967 = vpop.f32.mrf.mxu0
        %v968 = vadd.f32 0.0, %v967
        %v969 = vpop.f32.mrf.mxu0
        %v970 = vadd.f32 0.0, %v969
        %v971 = vpop.f32.mrf.mxu0
        %v972 = vpop.f32.mrf.mxu0
        %973 = vdwg.mxu0
        %974 = vmatprep.subr.bf16.mxu0 0
        %975 = vmatpush1.bf16.msra.mxu0 %v540
        %976 = vmatprep.subr.bf16.mxu0 0
        %977 = vmatpush1.bf16.msra.mxu0 %v537
        %978 = vmatprep.subr.bf16.mxu0 0
        %979 = vmatpush1.bf16.msra.mxu0 %v534
        %980 = vmatprep.subr.bf16.mxu0 0
        %981 = vmatpush1.bf16.msra.mxu0 %v531
        %982 = vmatprep.subr.bf16.mxu0 0
        %983 = vmatpush1.bf16.msra.mxu0 %v528
        %984 = vmatprep.subr.bf16.mxu0 0
        %985 = vmatpush1.bf16.msra.mxu0 %v525
        %986 = vmatprep.subr.bf16.mxu0 0
        %987 = vmatpush1.bf16.msra.mxu0 %v522
        %988 = vmatprep.subr.bf16.mxu0 0
        %989 = vmatpush1.bf16.msra.mxu0 %v519
        %990 = vmatprep.subr.bf16.mxu0 0
        %991 = vmatpush2.bf16.msra.mxu0 0
        %992 = vmatprep.subr.bf16.mxu0 0
        %993 = vmatpush2.bf16.msra.mxu0 0
        %994 = vmatprep.subr.bf16.mxu0 0
        %995 = vmatpush2.bf16.msra.mxu0 0
        %996 = vmatprep.subr.bf16.mxu0 0
        %997 = vmatpush2.bf16.msra.mxu0 0
        %998 = vmatprep.subr.bf16.mxu0 0
        %999 = vmatpush2.bf16.msra.mxu0 0
        %1000 = vmatprep.subr.bf16.mxu0 0
        %1001 = vmatpush2.bf16.msra.mxu0 0
        %1002 = vmatprep.subr.bf16.mxu0 0
        %1003 = vmatpush2.bf16.msra.mxu0 0
        %1004 = vmatprep.subr.bf16.mxu0 0
        %1005 = vmatpush2.bf16.msra.mxu0 0
        %1006 = vmatprep.mubr.bf16.mxu0 0
        %1007 = vmatmul.mubr.bf16.gmra.mxu0 %v932
        %v1008 = vpop.f32.mrf.mxu0
        %v1009 = vadd.f32 0.0, %v1008
        %v1010 = vpop.f32.mrf.mxu0
        %v1011 = vpop.f32.mrf.mxu0
        %v1012 = vpop.f32.mrf.mxu0
        %1013 = vdwg.mxu0
        %v1014 = vadd.f32 %v929, %v968
        %v1015 = vxor.u32 %v1014, 2147483648
        %v1016 = vmul.f32 %v1015, 1.442695
        %v1017 = vpow.pop %v1016
        %v1018 = vadd.f32 %v1017, 1.0
        %v1019 = vrcp.pop %v1018
        %v1020 = vmul.f32 1.0, %v1019
        %v1021 = vadd.f32 %v930, %v970
        %v1022 = vxor.u32 %v1021, 2147483648
        %v1023 = vmul.f32 %v1022, 1.442695
        %v1024 = vpow.pop %v1023
        %v1025 = vadd.f32 %v1024, 1.0
        %v1026 = vrcp.pop %v1025
        %v1027 = vmul.f32 1.0, %v1026
        %v1028 = vadd.f32 %v1009, %v664
        %v1029 = vmul.f32 %v1020, %v1028
        %v1030 = vadd.f32 %v931, %v1029
        %v1031 = vtanh.pop %v1030
        %v1032 = vsub.f32 1.0, %v1027
        %v1033 = vmul.f32 %v1032, %v1031
        %v1034 = vmul.f32 %v1027, %v920
        %v1035 = vadd.f32 %v1033, %v1034
        %s1036 = sadd.s32 %s427, %s925
        %p1037 = scmp.lt.s32.totalorder %s1036, 8
        %s1038 = scalar_select %p1037, 1, 0
        %v1039 = vstv %s1038
        %vm1040 = vcmp.eq.s32.totalorder %v1039, 1
        %v1041 = vsel %vm1040, %v1035, %v920
        %s1042 = smul.u32 %s925, 8
        %s1043 = scalar_lea.vmem %s365, %s1042 [#allocation8]
        %1044 = vst [vmem:[%s1043] sm:$0xff] %v1041
        %s1045 = smul.u32 %s425, 4
        %s1046 = sadd.s32 %s429, %s1045
        %s1047 = smul.u32 %s1046, 3
        %s1048 = smul.addr %s1047, 8
        %s1049 = scalar_lea.vmem %s310, %s1048 [#allocation2]
        %v1050 = vld [vmem:[%s1049] sm:$0xff]
        %v1051 = vld [vmem:[%s1049 + $0x8] sm:$0xff]
        %v1052 = vld [vmem:[%s1049 + $0x10] sm:$0xff]
        %v1053 = vpack.c.bf16 %v1041, %v1041
        %1054 = vmatprep.subr.bf16.mxu0 %v539
        %1055 = vmatpush1.bf16.msra.mxu0 %v538
        %1056 = vmatprep.subr.bf16.mxu0 %v536
        %1057 = vmatpush1.bf16.msra.mxu0 %v535
        %1058 = vmatprep.subr.bf16.mxu0 %v533
        %1059 = vmatpush1.bf16.msra.mxu0 %v532
        %1060 = vmatprep.subr.bf16.mxu0 %v530
        %1061 = vmatpush1.bf16.msra.mxu0 %v529
        %1062 = vmatprep.subr.bf16.mxu0 %v527
        %1063 = vmatpush1.bf16.msra.mxu0 %v526
        %1064 = vmatprep.subr.bf16.mxu0 %v524
        %1065 = vmatpush1.bf16.msra.mxu0 %v523
        %1066 = vmatprep.subr.bf16.mxu0 %v521
        %1067 = vmatpush1.bf16.msra.mxu0 %v520
        %1068 = vmatprep.subr.bf16.mxu0 %v518
        %1069 = vmatpush1.bf16.msra.mxu0 %v517
        %1070 = vmatprep.subr.bf16.mxu0 0
        %1071 = vmatpush2.bf16.msra.mxu0 0
        %1072 = vmatprep.subr.bf16.mxu0 0
        %1073 = vmatpush2.bf16.msra.mxu0 0
        %1074 = vmatprep.subr.bf16.mxu0 0
        %1075 = vmatpush2.bf16.msra.mxu0 0
        %1076 = vmatprep.subr.bf16.mxu0 0
        %1077 = vmatpush2.bf16.msra.mxu0 0
        %1078 = vmatprep.subr.bf16.mxu0 0
        %1079 = vmatpush2.bf16.msra.mxu0 0
        %1080 = vmatprep.subr.bf16.mxu0 0
        %1081 = vmatpush2.bf16.msra.mxu0 0
        %1082 = vmatprep.subr.bf16.mxu0 0
        %1083 = vmatpush2.bf16.msra.mxu0 0
        %1084 = vmatprep.subr.bf16.mxu0 0
        %1085 = vmatpush2.bf16.msra.mxu0 0
        %1086 = vmatprep.mubr.bf16.mxu0 0
        %1087 = vmatmul.mubr.bf16.gmra.mxu0 %v1053
        %v1088 = vpop.f32.mrf.mxu0
        %v1089 = vadd.f32 0.0, %v1088
        %v1090 = vpop.f32.mrf.mxu0
        %v1091 = vadd.f32 0.0, %v1090
        %v1092 = vpop.f32.mrf.mxu0
        %v1093 = vpop.f32.mrf.mxu0
        %1094 = vdwg.mxu0
        %1095 = vmatprep.subr.bf16.mxu0 0
        %1096 = vmatpush1.bf16.msra.mxu0 %v540
        %1097 = vmatprep.subr.bf16.mxu0 0
        %1098 = vmatpush1.bf16.msra.mxu0 %v537
        %1099 = vmatprep.subr.bf16.mxu0 0
        %1100 = vmatpush1.bf16.msra.mxu0 %v534
        %1101 = vmatprep.subr.bf16.mxu0 0
        %1102 = vmatpush1.bf16.msra.mxu0 %v531
        %1103 = vmatprep.subr.bf16.mxu0 0
        %1104 = vmatpush1.bf16.msra.mxu0 %v528
        %1105 = vmatprep.subr.bf16.mxu0 0
        %1106 = vmatpush1.bf16.msra.mxu0 %v525
        %1107 = vmatprep.subr.bf16.mxu0 0
        %1108 = vmatpush1.bf16.msra.mxu0 %v522
        %1109 = vmatprep.subr.bf16.mxu0 0
        %1110 = vmatpush1.bf16.msra.mxu0 %v519
        %1111 = vmatprep.subr.bf16.mxu0 0
        %1112 = vmatpush2.bf16.msra.mxu0 0
        %1113 = vmatprep.subr.bf16.mxu0 0
        %1114 = vmatpush2.bf16.msra.mxu0 0
        %1115 = vmatprep.subr.bf16.mxu0 0
        %1116 = vmatpush2.bf16.msra.mxu0 0
        %1117 = vmatprep.subr.bf16.mxu0 0
        %1118 = vmatpush2.bf16.msra.mxu0 0
        %1119 = vmatprep.subr.bf16.mxu0 0
        %1120 = vmatpush2.bf16.msra.mxu0 0
        %1121 = vmatprep.subr.bf16.mxu0 0
        %1122 = vmatpush2.bf16.msra.mxu0 0
        %1123 = vmatprep.subr.bf16.mxu0 0
        %1124 = vmatpush2.bf16.msra.mxu0 0
        %1125 = vmatprep.subr.bf16.mxu0 0
        %1126 = vmatpush2.bf16.msra.mxu0 0
        %1127 = vmatprep.mubr.bf16.mxu0 0
        %1128 = vmatmul.mubr.bf16.gmra.mxu0 %v1053
        %v1129 = vpop.f32.mrf.mxu0
        %v1130 = vadd.f32 0.0, %v1129
        %v1131 = vpop.f32.mrf.mxu0
        %v1132 = vpop.f32.mrf.mxu0
        %v1133 = vpop.f32.mrf.mxu0
        %1134 = vdwg.mxu0
        %v1135 = vadd.f32 %v1050, %v1089
        %v1136 = vxor.u32 %v1135, 2147483648
        %v1137 = vmul.f32 %v1136, 1.442695
        %v1138 = vpow.pop %v1137
        %v1139 = vadd.f32 %v1138, 1.0
        %v1140 = vrcp.pop %v1139
        %v1141 = vmul.f32 1.0, %v1140
        %v1142 = vadd.f32 %v1051, %v1091
        %v1143 = vxor.u32 %v1142, 2147483648
        %v1144 = vmul.f32 %v1143, 1.442695
        %v1145 = vpow.pop %v1144
        %v1146 = vadd.f32 %v1145, 1.0
        %v1147 = vrcp.pop %v1146
        %v1148 = vmul.f32 1.0, %v1147
        %v1149 = vadd.f32 %v1130, %v664
        %v1150 = vmul.f32 %v1141, %v1149
        %v1151 = vadd.f32 %v1052, %v1150
        %v1152 = vtanh.pop %v1151
        %v1153 = vsub.f32 1.0, %v1148
        %v1154 = vmul.f32 %v1153, %v1152
        %v1155 = vmul.f32 %v1148, %v1041
        %v1156 = vadd.f32 %v1154, %v1155
        %s1157 = sadd.s32 %s427, %s1046
        %p1158 = scmp.lt.s32.totalorder %s1157, 8
        %s1159 = scalar_select %p1158, 1, 0
        %v1160 = vstv %s1159
        %vm1161 = vcmp.eq.s32.totalorder %v1160, 1
        %v1162 = vsel %vm1161, %v1156, %v1041
        %s1163 = smul.u32 %s1046, 8
        %s1164 = scalar_lea.vmem %s365, %s1163 [#allocation8]
        %1165 = vst [vmem:[%s1164] sm:$0xff] %v1162
        %s1166 = smul.u32 %s425, 5
        %s1167 = sadd.s32 %s429, %s1166
        %s1168 = smul.u32 %s1167, 3
        %s1169 = smul.addr %s1168, 8
        %s1170 = scalar_lea.vmem %s310, %s1169 [#allocation2]
        %v1171 = vld [vmem:[%s1170] sm:$0xff]
        %v1172 = vld [vmem:[%s1170 + $0x8] sm:$0xff]
        %v1173 = vld [vmem:[%s1170 + $0x10] sm:$0xff]
        %v1174 = vpack.c.bf16 %v1162, %v1162
        %1175 = vmatprep.subr.bf16.mxu0 %v539
        %1176 = vmatpush1.bf16.msra.mxu0 %v538
        %1177 = vmatprep.subr.bf16.mxu0 %v536
        %1178 = vmatpush1.bf16.msra.mxu0 %v535
        %1179 = vmatprep.subr.bf16.mxu0 %v533
        %1180 = vmatpush1.bf16.msra.mxu0 %v532
        %1181 = vmatprep.subr.bf16.mxu0 %v530
        %1182 = vmatpush1.bf16.msra.mxu0 %v529
        %1183 = vmatprep.subr.bf16.mxu0 %v527
        %1184 = vmatpush1.bf16.msra.mxu0 %v526
        %1185 = vmatprep.subr.bf16.mxu0 %v524
        %1186 = vmatpush1.bf16.msra.mxu0 %v523
        %1187 = vmatprep.subr.bf16.mxu0 %v521
        %1188 = vmatpush1.bf16.msra.mxu0 %v520
        %1189 = vmatprep.subr.bf16.mxu0 %v518
        %1190 = vmatpush1.bf16.msra.mxu0 %v517
        %1191 = vmatprep.subr.bf16.mxu0 0
        %1192 = vmatpush2.bf16.msra.mxu0 0
        %1193 = vmatprep.subr.bf16.mxu0 0
        %1194 = vmatpush2.bf16.msra.mxu0 0
        %1195 = vmatprep.subr.bf16.mxu0 0
        %1196 = vmatpush2.bf16.msra.mxu0 0
        %1197 = vmatprep.subr.bf16.mxu0 0
        %1198 = vmatpush2.bf16.msra.mxu0 0
        %1199 = vmatprep.subr.bf16.mxu0 0
        %1200 = vmatpush2.bf16.msra.mxu0 0
        %1201 = vmatprep.subr.bf16.mxu0 0
        %1202 = vmatpush2.bf16.msra.mxu0 0
        %1203 = vmatprep.subr.bf16.mxu0 0
        %1204 = vmatpush2.bf16.msra.mxu0 0
        %1205 = vmatprep.subr.bf16.mxu0 0
        %1206 = vmatpush2.bf16.msra.mxu0 0
        %1207 = vmatprep.mubr.bf16.mxu0 0
        %1208 = vmatmul.mubr.bf16.gmra.mxu0 %v1174
        %v1209 = vpop.f32.mrf.mxu0
        %v1210 = vadd.f32 0.0, %v1209
        %v1211 = vpop.f32.mrf.mxu0
        %v1212 = vadd.f32 0.0, %v1211
        %v1213 = vpop.f32.mrf.mxu0
        %v1214 = vpop.f32.mrf.mxu0
        %1215 = vdwg.mxu0
        %1216 = vmatprep.subr.bf16.mxu0 0
        %1217 = vmatpush1.bf16.msra.mxu0 %v540
        %1218 = vmatprep.subr.bf16.mxu0 0
        %1219 = vmatpush1.bf16.msra.mxu0 %v537
        %1220 = vmatprep.subr.bf16.mxu0 0
        %1221 = vmatpush1.bf16.msra.mxu0 %v534
        %1222 = vmatprep.subr.bf16.mxu0 0
        %1223 = vmatpush1.bf16.msra.mxu0 %v531
        %1224 = vmatprep.subr.bf16.mxu0 0
        %1225 = vmatpush1.bf16.msra.mxu0 %v528
        %1226 = vmatprep.subr.bf16.mxu0 0
        %1227 = vmatpush1.bf16.msra.mxu0 %v525
        %1228 = vmatprep.subr.bf16.mxu0 0
        %1229 = vmatpush1.bf16.msra.mxu0 %v522
        %1230 = vmatprep.subr.bf16.mxu0 0
        %1231 = vmatpush1.bf16.msra.mxu0 %v519
        %1232 = vmatprep.subr.bf16.mxu0 0
        %1233 = vmatpush2.bf16.msra.mxu0 0
        %1234 = vmatprep.subr.bf16.mxu0 0
        %1235 = vmatpush2.bf16.msra.mxu0 0
        %1236 = vmatprep.subr.bf16.mxu0 0
        %1237 = vmatpush2.bf16.msra.mxu0 0
        %1238 = vmatprep.subr.bf16.mxu0 0
        %1239 = vmatpush2.bf16.msra.mxu0 0
        %1240 = vmatprep.subr.bf16.mxu0 0
        %1241 = vmatpush2.bf16.msra.mxu0 0
        %1242 = vmatprep.subr.bf16.mxu0 0
        %1243 = vmatpush2.bf16.msra.mxu0 0
        %1244 = vmatprep.subr.bf16.mxu0 0
        %1245 = vmatpush2.bf16.msra.mxu0 0
        %1246 = vmatprep.subr.bf16.mxu0 0
        %1247 = vmatpush2.bf16.msra.mxu0 0
        %1248 = vmatprep.mubr.bf16.mxu0 0
        %1249 = vmatmul.mubr.bf16.gmra.mxu0 %v1174
        %v1250 = vpop.f32.mrf.mxu0
        %v1251 = vadd.f32 0.0, %v1250
        %v1252 = vpop.f32.mrf.mxu0
        %v1253 = vpop.f32.mrf.mxu0
        %v1254 = vpop.f32.mrf.mxu0
        %1255 = vdwg.mxu0
        %v1256 = vadd.f32 %v1171, %v1210
        %v1257 = vxor.u32 %v1256, 2147483648
        %v1258 = vmul.f32 %v1257, 1.442695
        %v1259 = vpow.pop %v1258
        %v1260 = vadd.f32 %v1259, 1.0
        %v1261 = vrcp.pop %v1260
        %v1262 = vmul.f32 1.0, %v1261
        %v1263 = vadd.f32 %v1172, %v1212
        %v1264 = vxor.u32 %v1263, 2147483648
        %v1265 = vmul.f32 %v1264, 1.442695
        %v1266 = vpow.pop %v1265
        %v1267 = vadd.f32 %v1266, 1.0
        %v1268 = vrcp.pop %v1267
        %v1269 = vmul.f32 1.0, %v1268
        %v1270 = vadd.f32 %v1251, %v664
        %v1271 = vmul.f32 %v1262, %v1270
        %v1272 = vadd.f32 %v1173, %v1271
        %v1273 = vtanh.pop %v1272
        %v1274 = vsub.f32 1.0, %v1269
        %v1275 = vmul.f32 %v1274, %v1273
        %v1276 = vmul.f32 %v1269, %v1162
        %v1277 = vadd.f32 %v1275, %v1276
        %s1278 = sadd.s32 %s427, %s1167
        %p1279 = scmp.lt.s32.totalorder %s1278, 8
        %s1280 = scalar_select %p1279, 1, 0
        %v1281 = vstv %s1280
        %vm1282 = vcmp.eq.s32.totalorder %v1281, 1
        %v1283 = vsel %vm1282, %v1277, %v1162
        %s1284 = smul.u32 %s1167, 8
        %s1285 = scalar_lea.vmem %s365, %s1284 [#allocation8]
        %1286 = vst [vmem:[%s1285] sm:$0xff] %v1283
        %s1287 = smul.u32 %s425, 6
        %s1288 = sadd.s32 %s429, %s1287
        %s1289 = smul.u32 %s1288, 3
        %s1290 = smul.addr %s1289, 8
        %s1291 = scalar_lea.vmem %s310, %s1290 [#allocation2]
        %v1292 = vld [vmem:[%s1291] sm:$0xff]
        %v1293 = vld [vmem:[%s1291 + $0x8] sm:$0xff]
        %v1294 = vld [vmem:[%s1291 + $0x10] sm:$0xff]
        %v1295 = vpack.c.bf16 %v1283, %v1283
        %1296 = vmatprep.subr.bf16.mxu0 %v539
        %1297 = vmatpush1.bf16.msra.mxu0 %v538
        %1298 = vmatprep.subr.bf16.mxu0 %v536
        %1299 = vmatpush1.bf16.msra.mxu0 %v535
        %1300 = vmatprep.subr.bf16.mxu0 %v533
        %1301 = vmatpush1.bf16.msra.mxu0 %v532
        %1302 = vmatprep.subr.bf16.mxu0 %v530
        %1303 = vmatpush1.bf16.msra.mxu0 %v529
        %1304 = vmatprep.subr.bf16.mxu0 %v527
        %1305 = vmatpush1.bf16.msra.mxu0 %v526
        %1306 = vmatprep.subr.bf16.mxu0 %v524
        %1307 = vmatpush1.bf16.msra.mxu0 %v523
        %1308 = vmatprep.subr.bf16.mxu0 %v521
        %1309 = vmatpush1.bf16.msra.mxu0 %v520
        %1310 = vmatprep.subr.bf16.mxu0 %v518
        %1311 = vmatpush1.bf16.msra.mxu0 %v517
        %1312 = vmatprep.subr.bf16.mxu0 0
        %1313 = vmatpush2.bf16.msra.mxu0 0
        %1314 = vmatprep.subr.bf16.mxu0 0
        %1315 = vmatpush2.bf16.msra.mxu0 0
        %1316 = vmatprep.subr.bf16.mxu0 0
        %1317 = vmatpush2.bf16.msra.mxu0 0
        %1318 = vmatprep.subr.bf16.mxu0 0
        %1319 = vmatpush2.bf16.msra.mxu0 0
        %1320 = vmatprep.subr.bf16.mxu0 0
        %1321 = vmatpush2.bf16.msra.mxu0 0
        %1322 = vmatprep.subr.bf16.mxu0 0
        %1323 = vmatpush2.bf16.msra.mxu0 0
        %1324 = vmatprep.subr.bf16.mxu0 0
        %1325 = vmatpush2.bf16.msra.mxu0 0
        %1326 = vmatprep.subr.bf16.mxu0 0
        %1327 = vmatpush2.bf16.msra.mxu0 0
        %1328 = vmatprep.mubr.bf16.mxu0 0
        %1329 = vmatmul.mubr.bf16.gmra.mxu0 %v1295
        %v1330 = vpop.f32.mrf.mxu0
        %v1331 = vadd.f32 0.0, %v1330
        %v1332 = vpop.f32.mrf.mxu0
        %v1333 = vadd.f32 0.0, %v1332
        %v1334 = vpop.f32.mrf.mxu0
        %v1335 = vpop.f32.mrf.mxu0
        %1336 = vdwg.mxu0
        %1337 = vmatprep.subr.bf16.mxu0 0
        %1338 = vmatpush1.bf16.msra.mxu0 %v540
        %1339 = vmatprep.subr.bf16.mxu0 0
        %1340 = vmatpush1.bf16.msra.mxu0 %v537
        %1341 = vmatprep.subr.bf16.mxu0 0
        %1342 = vmatpush1.bf16.msra.mxu0 %v534
        %1343 = vmatprep.subr.bf16.mxu0 0
        %1344 = vmatpush1.bf16.msra.mxu0 %v531
        %1345 = vmatprep.subr.bf16.mxu0 0
        %1346 = vmatpush1.bf16.msra.mxu0 %v528
        %1347 = vmatprep.subr.bf16.mxu0 0
        %1348 = vmatpush1.bf16.msra.mxu0 %v525
        %1349 = vmatprep.subr.bf16.mxu0 0
        %1350 = vmatpush1.bf16.msra.mxu0 %v522
        %1351 = vmatprep.subr.bf16.mxu0 0
        %1352 = vmatpush1.bf16.msra.mxu0 %v519
        %1353 = vmatprep.subr.bf16.mxu0 0
        %1354 = vmatpush2.bf16.msra.mxu0 0
        %1355 = vmatprep.subr.bf16.mxu0 0
        %1356 = vmatpush2.bf16.msra.mxu0 0
        %1357 = vmatprep.subr.bf16.mxu0 0
        %1358 = vmatpush2.bf16.msra.mxu0 0
        %1359 = vmatprep.subr.bf16.mxu0 0
        %1360 = vmatpush2.bf16.msra.mxu0 0
        %1361 = vmatprep.subr.bf16.mxu0 0
        %1362 = vmatpush2.bf16.msra.mxu0 0
        %1363 = vmatprep.subr.bf16.mxu0 0
        %1364 = vmatpush2.bf16.msra.mxu0 0
        %1365 = vmatprep.subr.bf16.mxu0 0
        %1366 = vmatpush2.bf16.msra.mxu0 0
        %1367 = vmatprep.subr.bf16.mxu0 0
        %1368 = vmatpush2.bf16.msra.mxu0 0
        %1369 = vmatprep.mubr.bf16.mxu0 0
        %1370 = vmatmul.mubr.bf16.gmra.mxu0 %v1295
        %v1371 = vpop.f32.mrf.mxu0
        %v1372 = vadd.f32 0.0, %v1371
        %v1373 = vpop.f32.mrf.mxu0
        %v1374 = vpop.f32.mrf.mxu0
        %v1375 = vpop.f32.mrf.mxu0
        %1376 = vdwg.mxu0
        %v1377 = vadd.f32 %v1292, %v1331
        %v1378 = vxor.u32 %v1377, 2147483648
        %v1379 = vmul.f32 %v1378, 1.442695
        %v1380 = vpow.pop %v1379
        %v1381 = vadd.f32 %v1380, 1.0
        %v1382 = vrcp.pop %v1381
        %v1383 = vmul.f32 1.0, %v1382
        %v1384 = vadd.f32 %v1293, %v1333
        %v1385 = vxor.u32 %v1384, 2147483648
        %v1386 = vmul.f32 %v1385, 1.442695
        %v1387 = vpow.pop %v1386
        %v1388 = vadd.f32 %v1387, 1.0
        %v1389 = vrcp.pop %v1388
        %v1390 = vmul.f32 1.0, %v1389
        %v1391 = vadd.f32 %v1372, %v664
        %v1392 = vmul.f32 %v1383, %v1391
        %v1393 = vadd.f32 %v1294, %v1392
        %v1394 = vtanh.pop %v1393
        %v1395 = vsub.f32 1.0, %v1390
        %v1396 = vmul.f32 %v1395, %v1394
        %v1397 = vmul.f32 %v1390, %v1283
        %v1398 = vadd.f32 %v1396, %v1397
        %s1399 = sadd.s32 %s427, %s1288
        %p1400 = scmp.lt.s32.totalorder %s1399, 8
        %s1401 = scalar_select %p1400, 1, 0
        %v1402 = vstv %s1401
        %vm1403 = vcmp.eq.s32.totalorder %v1402, 1
        %v1404 = vsel %vm1403, %v1398, %v1283
        %s1405 = smul.u32 %s1288, 8
        %s1406 = scalar_lea.vmem %s365, %s1405 [#allocation8]
        %1407 = vst [vmem:[%s1406] sm:$0xff] %v1404
        %s1408 = smul.u32 %s425, 7
        %s1409 = sadd.s32 %s429, %s1408
        %s1410 = smul.u32 %s1409, 3
        %s1411 = smul.addr %s1410, 8
        %s1412 = scalar_lea.vmem %s310, %s1411 [#allocation2]
        %v1413 = vld [vmem:[%s1412] sm:$0xff]
        %v1414 = vld [vmem:[%s1412 + $0x8] sm:$0xff]
        %v1415 = vld [vmem:[%s1412 + $0x10] sm:$0xff]
        %v1416 = vpack.c.bf16 %v1404, %v1404
        %1417 = vmatprep.subr.bf16.mxu0 %v539
        %1418 = vmatpush1.bf16.msra.mxu0 %v538
        %1419 = vmatprep.subr.bf16.mxu0 %v536
        %1420 = vmatpush1.bf16.msra.mxu0 %v535
        %1421 = vmatprep.subr.bf16.mxu0 %v533
        %1422 = vmatpush1.bf16.msra.mxu0 %v532
        %1423 = vmatprep.subr.bf16.mxu0 %v530
        %1424 = vmatpush1.bf16.msra.mxu0 %v529
        %1425 = vmatprep.subr.bf16.mxu0 %v527
        %1426 = vmatpush1.bf16.msra.mxu0 %v526
        %1427 = vmatprep.subr.bf16.mxu0 %v524
        %1428 = vmatpush1.bf16.msra.mxu0 %v523
        %1429 = vmatprep.subr.bf16.mxu0 %v521
        %1430 = vmatpush1.bf16.msra.mxu0 %v520
        %1431 = vmatprep.subr.bf16.mxu0 %v518
        %1432 = vmatpush1.bf16.msra.mxu0 %v517
        %1433 = vmatprep.subr.bf16.mxu0 0
        %1434 = vmatpush2.bf16.msra.mxu0 0
        %1435 = vmatprep.subr.bf16.mxu0 0
        %1436 = vmatpush2.bf16.msra.mxu0 0
        %1437 = vmatprep.subr.bf16.mxu0 0
        %1438 = vmatpush2.bf16.msra.mxu0 0
        %1439 = vmatprep.subr.bf16.mxu0 0
        %1440 = vmatpush2.bf16.msra.mxu0 0
        %1441 = vmatprep.subr.bf16.mxu0 0
        %1442 = vmatpush2.bf16.msra.mxu0 0
        %1443 = vmatprep.subr.bf16.mxu0 0
        %1444 = vmatpush2.bf16.msra.mxu0 0
        %1445 = vmatprep.subr.bf16.mxu0 0
        %1446 = vmatpush2.bf16.msra.mxu0 0
        %1447 = vmatprep.subr.bf16.mxu0 0
        %1448 = vmatpush2.bf16.msra.mxu0 0
        %1449 = vmatprep.mubr.bf16.mxu0 0
        %1450 = vmatmul.mubr.bf16.gmra.mxu0 %v1416
        %v1451 = vpop.f32.mrf.mxu0
        %v1452 = vadd.f32 0.0, %v1451
        %v1453 = vpop.f32.mrf.mxu0
        %v1454 = vadd.f32 0.0, %v1453
        %v1455 = vpop.f32.mrf.mxu0
        %v1456 = vpop.f32.mrf.mxu0
        %1457 = vdwg.mxu0
        %1458 = vmatprep.subr.bf16.mxu0 0
        %1459 = vmatpush1.bf16.msra.mxu0 %v540
        %1460 = vmatprep.subr.bf16.mxu0 0
        %1461 = vmatpush1.bf16.msra.mxu0 %v537
        %1462 = vmatprep.subr.bf16.mxu0 0
        %1463 = vmatpush1.bf16.msra.mxu0 %v534
        %1464 = vmatprep.subr.bf16.mxu0 0
        %1465 = vmatpush1.bf16.msra.mxu0 %v531
        %1466 = vmatprep.subr.bf16.mxu0 0
        %1467 = vmatpush1.bf16.msra.mxu0 %v528
        %1468 = vmatprep.subr.bf16.mxu0 0
        %1469 = vmatpush1.bf16.msra.mxu0 %v525
        %1470 = vmatprep.subr.bf16.mxu0 0
        %1471 = vmatpush1.bf16.msra.mxu0 %v522
        %1472 = vmatprep.subr.bf16.mxu0 0
        %1473 = vmatpush1.bf16.msra.mxu0 %v519
        %1474 = vmatprep.subr.bf16.mxu0 0
        %1475 = vmatpush2.bf16.msra.mxu0 0
        %1476 = vmatprep.subr.bf16.mxu0 0
        %1477 = vmatpush2.bf16.msra.mxu0 0
        %1478 = vmatprep.subr.bf16.mxu0 0
        %1479 = vmatpush2.bf16.msra.mxu0 0
        %1480 = vmatprep.subr.bf16.mxu0 0
        %1481 = vmatpush2.bf16.msra.mxu0 0
        %1482 = vmatprep.subr.bf16.mxu0 0
        %1483 = vmatpush2.bf16.msra.mxu0 0
        %1484 = vmatprep.subr.bf16.mxu0 0
        %1485 = vmatpush2.bf16.msra.mxu0 0
        %1486 = vmatprep.subr.bf16.mxu0 0
        %1487 = vmatpush2.bf16.msra.mxu0 0
        %1488 = vmatprep.subr.bf16.mxu0 0
        %1489 = vmatpush2.bf16.msra.mxu0 0
        %1490 = vmatprep.mubr.bf16.mxu0 0
        %1491 = vmatmul.mubr.bf16.gmra.mxu0 %v1416
        %v1492 = vpop.f32.mrf.mxu0
        %v1493 = vadd.f32 0.0, %v1492
        %v1494 = vpop.f32.mrf.mxu0
        %v1495 = vpop.f32.mrf.mxu0
        %v1496 = vpop.f32.mrf.mxu0
        %1497 = vdwg.mxu0
        %v1498 = vadd.f32 %v1413, %v1452
        %v1499 = vxor.u32 %v1498, 2147483648
        %v1500 = vmul.f32 %v1499, 1.442695
        %v1501 = vpow.pop %v1500
        %v1502 = vadd.f32 %v1501, 1.0
        %v1503 = vrcp.pop %v1502
        %v1504 = vmul.f32 1.0, %v1503
        %v1505 = vadd.f32 %v1414, %v1454
        %v1506 = vxor.u32 %v1505, 2147483648
        %v1507 = vmul.f32 %v1506, 1.442695
        %v1508 = vpow.pop %v1507
        %v1509 = vadd.f32 %v1508, 1.0
        %v1510 = vrcp.pop %v1509
        %v1511 = vmul.f32 1.0, %v1510
        %v1512 = vadd.f32 %v1493, %v664
        %v1513 = vmul.f32 %v1504, %v1512
        %v1514 = vadd.f32 %v1415, %v1513
        %v1515 = vtanh.pop %v1514
        %v1516 = vsub.f32 1.0, %v1511
        %v1517 = vmul.f32 %v1516, %v1515
        %v1518 = vmul.f32 %v1511, %v1404
        %v1519 = vadd.f32 %v1517, %v1518
        %s1520 = sadd.s32 %s427, %s1409
        %p1521 = scmp.lt.s32.totalorder %s1520, 8
        %s1522 = scalar_select %p1521, 1, 0
        %v1523 = vstv %s1522
        %vm1524 = vcmp.eq.s32.totalorder %v1523, 1
        %v1525 = vsel %vm1524, %v1519, %v1404
        %s1526 = smul.u32 %s1409, 8
        %s1527 = scalar_lea.vmem %s365, %s1526 [#allocation8]
        %1528 = vst [vmem:[%s1527] sm:$0xff] %v1525
        %1529 = vst [vmem:[%s372] sm:$0xff] %v1525
        %s1530 = sand.u32 %s169, 1
        %s1531 = scalar_lea.sflag [#allocation4], %s1530
        %s1532 = sand.u32 %s169, 1
        %s1533 = smul.addr %s1532, 64
        %s1534 = scalar_lea.vmem [#allocation8], %s1533
        %s1535 = sand.u32 %s195, 1
        %s1536 = scalar_lea.sflag [#allocation10], %s1535
        %s1537 = sand.u32 %s195, 1
        %s1538 = smul.addr %s1537, 8
        %s1539 = scalar_lea.vmem [#allocation9], %s1538
        // Predicated region
        $region53: #{tpu_custom_call.1} parent=35 // pred_check
          %p1540 = pneg %p179
        $region54: #{tpu_custom_call.1} parent=35 // pred_check_branch
          %1542 = sbr.rel (%p1540) target = $region56
        $region55: #{tpu_custom_call.1} parent=35 // pred_region
          %s1543 = smul.u32 %s33, 2
          %s1544 = ssub.s32 1, %s1543
          %s1545 = smul.u32 %s1544, %s34
          %s1546 = smul.u32 8, %s1545
          %s1548 = ssub.s32 1024, 1024
          %1549 = vsyncadd %s1531, %s1548
          %s1550 = smul.addr %s33, 8
          %s1551 = sadd.s32 %s1546, %s1550
          %s1552 = smul.addr %s1551, 128
          %s1553 = scalar_lea.hbm %s4, %s1552
          %s1554 = sshll.u32 %s1534, 4
          %s1555 = int_to_ptr.vmem [resolvable:$true] %s1554
          %1560 = dma.vmem_to_hbm [thread:$0]  %s1555, 1024, %s1553, %s1531, 128, 128, 8
        $region56: #{tpu_custom_call.1} parent=35 // pred_fallthru
          _
        // Predicated region
        $region57: #{tpu_custom_call.1} parent=35 // pred_check
          %p1561 = pneg %p205
        $region58: #{tpu_custom_call.1} parent=35 // pred_check_branch
          %1563 = sbr.rel (%p1561) target = $region60
        $region59: #{tpu_custom_call.1} parent=35 // pred_region
          %s1565 = ssub.s32 128, 128
          %1566 = vsyncadd %s1536, %s1565
          %s1567 = smul.addr %s33, 128
          %s1568 = scalar_lea.hbm %s5, %s1567
          %s1570 = sshll.u32 %s1539, 4
          %s1571 = int_to_ptr.vmem [resolvable:$true] %s1570
          %1573 = dma.vmem_to_hbm [thread:$0]  %s1571, 128, %s1568, %s1536
        $region60: #{tpu_custom_call.1} parent=35 // pred_fallthru
          _
      $region36: #{tpu_custom_call.1} parent=5 // pred_fallthru
        _
      %p1574 = scmp.le.s32.totalorder 2, %s24
      // Predicated region
      $region61: #{tpu_custom_call.1} parent=5 // pred_check
        %p1575 = pneg %p1574
      $region62: #{tpu_custom_call.1} parent=5 // pred_check_branch
        %1577 = sbr.rel (%p1575) target = $region64
      $region63: #{tpu_custom_call.1} parent=5 // pred_region
        %s1578 = ssub.s32 %s24, 2
        // Predicated region
        $region65: #{tpu_custom_call.1} parent=63 // pred_check
          %p1579 = pneg %p185
        $region66: #{tpu_custom_call.1} parent=63 // pred_check_branch
          %1581 = sbr.rel (%p1579) target = $region68
        $region67: #{tpu_custom_call.1} parent=63 // pred_region
          %s1582 = sand.u32 %s170, 1
          %s1583 = scalar_lea.sflag [#allocation4], %s1582
          %s1584 = sand.u32 %s170, 1
          %s1585 = smul.addr %s1584, 64
          %s1586 = scalar_lea.vmem [#allocation8], %s1585
          %1587 = dma.done %s1583, 1024
        $region68: #{tpu_custom_call.1} parent=63 // pred_fallthru
          _
        // Predicated region
        $region69: #{tpu_custom_call.1} parent=63 // pred_check
          %p1588 = pneg %p211
        $region70: #{tpu_custom_call.1} parent=63 // pred_check_branch
          %1590 = sbr.rel (%p1588) target = $region72
        $region71: #{tpu_custom_call.1} parent=63 // pred_region
          %s1591 = sand.u32 %s196, 1
          %s1592 = scalar_lea.sflag [#allocation10], %s1591
          %s1593 = sand.u32 %s196, 1
          %s1594 = smul.addr %s1593, 8
          %s1595 = scalar_lea.vmem [#allocation9], %s1594
          %1596 = dma.done %s1592, 128
        $region72: #{tpu_custom_call.1} parent=63 // pred_fallthru
          _
      $region64: #{tpu_custom_call.1} parent=5 // pred_fallthru
        _
    $region6: #{tpu_custom_call.1} parent=1 // loop_footer
      %s28 = sadd.s32 1, %s24
    $region7: #{tpu_custom_call.1} parent=1 // loop_footer_branch
      %23 = sbr.rel target = $region3
    $region8: #{tpu_custom_call.1} parent=1 // loop_exit
      _
    %1597 = vsyncpa [#allocation3], 1
    %s1598 = scalar_lea.sflag [#allocation3], 1
    %1599 = vsyncpa %s1598, 1
    %1600 = vsyncpa [#allocation6], 1
    %s1601 = scalar_lea.sflag [#allocation6], 1
    %1602 = vsyncpa %s1601, 1
    %1603 = vsyncpa [#allocation4], 1
    %s1604 = scalar_lea.sflag [#allocation4], 1
    %1605 = vsyncpa %s1604, 1
    %1606 = vsyncpa [#allocation10], 1
    %s1607 = scalar_lea.sflag [#allocation10], 1
    %1608 = vsyncpa %s1607, 1

</llo_original>
